<compile_context>
chip_gen: v7x
topology: tpu7x:2x2x1
jax: 0.10.0
libtpu: 0.0.40
codegen_flags: <defaults>
</compile_context>

<pallas_src>
import functools

import jax
import jax.numpy as jnp
from jax.experimental import pallas as pl
from jax.experimental.pallas import tpu as pltpu

OUT_PAD = 8  # 2 output logits zero-padded to one full sublane group


def _elu(v):
    # F.elu, alpha=1.0 (jnp.where keeps the untaken exp branch harmless)
    return jnp.where(v > 0, v, jnp.exp(v) - 1.0)


def _round_up(a, b):
    return ((a + b - 1) // b) * b


def _cdiv(a, b):
    return (a + b - 1) // b


def _tensorcores_per_chip():
    """Perf-only heuristic: chips whose TensorCores are sharded by 'parallel'."""
    try:
        kind = jax.devices()[0].device_kind.lower()
    except Exception:
        return 1
    return 2 if any(t in kind for t in ("v4", "v5p", "7")) else 1


def net_kernel(x_ref, win_ref, wa_ref, whid_ref, b_ref, y_ref, *,
               in_size, e_node):
    """Fused Net forward; activations are [features, bm] (batch on lanes)."""
    f32 = jnp.float32
    ins, en = in_size, e_node
    hid = 2 * ins

    # Static row offsets into the packed slabs (Python ints at trace time).
    o_we, o_wbr, o_w1m = 0, en, en + hid            # w_in slab  (K = in_size)
    o_w1h, o_w2, o_w3 = 0, hid, 2 * hid             # w_hid slab (K = hid)
    b_be = 0
    b_ba = en
    b_bbr = en + 2 * ins
    b_b1 = b_bbr + hid
    b_b2 = b_b1 + hid
    b_b3 = b_b2 + hid

    def mm(w, a):
        return jnp.dot(w, a, preferred_element_type=f32)

    xT = x_ref[...]                                               # [ins, bm]

    # E = tanh(E_layer(x))^T
    E = jnp.tanh(mm(win_ref[pl.ds(o_we, en), :], xT)
                 + b_ref[pl.ds(b_be, en), :])                     # [en, bm]

    # in_size independent 2-class attention heads, batched into one dot:
    # rows [0, ins) = class-0 logits, rows [ins, 2*ins) = class-1 logits.
    la = jnp.tanh(mm(wa_ref[...], E) + b_ref[pl.ds(b_ba, 2 * ins), :])
    # softmax([l0, l1])[..., 1] == sigmoid(l1 - l0); sublane-aligned slices.
    A = jax.nn.sigmoid(la[ins:, :] - la[:ins, :])                 # [ins, bm]

    middle = xT * A                                               # torch.mul(x, A)

    # gene / cnv / clin / Affinity branches fused into one [hid, ins] weight
    # (rows = [gene(d0) | cnv(d1) | clin(d2) | fusion(d0+d1) | zero-pad]).
    branch = _elu(mm(win_ref[pl.ds(o_wbr, hid), :], middle)
                  + b_ref[pl.ds(b_bbr, hid), :])                  # [hid, bm]

    # linear_1 over cat([gene,cnv,clin,fusion, middle_clin]) as two dots.
    y1 = _elu(mm(whid_ref[pl.ds(o_w1h, hid), :], branch)
              + mm(win_ref[pl.ds(o_w1m, hid), :], middle)
              + b_ref[pl.ds(b_b1, hid), :])                       # [hid, bm]

    y2 = _elu(mm(whid_ref[pl.ds(o_w2, hid), :], y1)
              + b_ref[pl.ds(b_b2, hid), :])                       # [hid, bm]

    # linear_3 (2 logits, zero-padded rows 2:OUT_PAD)
    y3 = _elu(mm(whid_ref[pl.ds(o_w3, OUT_PAD), :], y2)
              + b_ref[pl.ds(b_b3, OUT_PAD), :])                   # [OUT_PAD, bm]

    y_ref[...] = y3


def prepare_kernel_params(p, affinity_matrix, dim_feature):
    """Offline re-packing of the weights into 3 transposed, padded slabs."""
    d0, d1, d2 = dim_feature
    in_size = d0 + d1 + d2
    e_node = p["we"].shape[1]
    hid = 2 * in_size
    f32 = jnp.float32

    def pad_rows(w, start, total):
        out = jnp.zeros((total, w.shape[1]), f32)
        return out.at[start:start + w.shape[0]].set(w)

    # --- E layer: [e_node, in_size]
    we_t = p["we"].T

    # --- batched attention heads: [2*in_size, e_node], rows = [l0 | l1]
    wa_t = jnp.concatenate([p["wa0"].T, p["wa1"].T], axis=0)
    ba_t = jnp.concatenate([p["ba0"].T, p["ba1"].T], axis=0)

    # --- fused gene/cnv/clin/affinity branch: [hid, in_size]
    #     ((m @ aff) @ waf == m @ (aff @ waf): Affinity matrix folded in)
    wg_p = pad_rows(p["wg"], 0, in_size)
    wc_p = pad_rows(p["wc"], d0, in_size)
    wcl_p = pad_rows(p["wcl"], d0 + d1, in_size)
    waf_p = pad_rows(affinity_matrix @ p["waf"], 0, in_size)
    wbr_t = jnp.concatenate([wg_p, wc_p, wcl_p, waf_p], axis=1).T   # [hid-d2, in]
    wbr_t = pad_rows(wbr_t, 0, hid)                                 # -> [hid, in]
    bbr_t = pad_rows(
        jnp.concatenate([p["bg"], p["bc"], p["bcl"], p["baf"]], axis=1).T,
        0, hid)                                                     # [hid, 1]

    # --- linear_1 split: branch part [hid, hid] + middle-clin part [hid, in]
    split = hid - d2
    w1h_t = jnp.zeros((hid, hid), f32).at[:, :split].set(p["w1"][:split].T)
    w1m_t = pad_rows(p["w1"][split:], d0 + d1, in_size).T           # [hid, in]

    # --- linear_2, linear_3 (padded to OUT_PAD rows)
    w2_t = p["w2"].T
    w3_t = pad_rows(p["w3"].T, 0, OUT_PAD)                          # [OUT_PAD, hid]
    b3_t = pad_rows(p["b3"].T, 0, OUT_PAD)                          # [OUT_PAD, 1]

    # --- pack into contiguous slabs (fewer DMA streams; static pl.ds views)
    w_in = jnp.concatenate([we_t, wbr_t, w1m_t], axis=0)            # [en+2*hid, in]
    w_hid = jnp.concatenate([w1h_t, w2_t, w3_t], axis=0)            # [2*hid+8, hid]
    b_slab = jnp.concatenate(
        [p["be"].T, ba_t, bbr_t, p["b1"].T, p["b2"].T, b3_t], axis=0)

    return dict(w_in=w_in, wa=wa_t, w_hid=w_hid, b=b_slab,
                in_size=in_size, e_node=e_node)


def net_forward(x, affinity_matrix, params, dim_feature, max_block_m=1024):
    kp = prepare_kernel_params(params, affinity_matrix, dim_feature)
    in_size, e_node = kp["in_size"], kp["e_node"]

    n = x.shape[0]
    n128 = _round_up(max(n, 1), 128)          # lane axis must be 128-aligned
    if _tensorcores_per_chip() >= 2 and n128 >= 256:
        bm = min(_round_up(_cdiv(n128, 2), 128), max_block_m)  # 2 balanced steps
    else:
        bm = min(n128, max_block_m)                            # 1 (few) big step
    steps = _cdiv(n128, bm)
    n_pad = steps * bm

    # Batch on the lane axis: kernel activations are [features, bm].
    xT = jnp.pad(x.astype(jnp.float32), ((0, n_pad - n), (0, 0))).T  # [in, n_pad]

    w_in, wa, w_hid, b = kp["w_in"], kp["wa"], kp["w_hid"], kp["b"]

    kernel = functools.partial(net_kernel, in_size=in_size, e_node=e_node)
    y3t = pl.pallas_call(
        kernel,
        grid=(steps,),
        in_specs=[
            pl.BlockSpec((in_size, bm), lambda i: (0, i)),
            pl.BlockSpec(w_in.shape, lambda i: (0, 0)),
            pl.BlockSpec(wa.shape, lambda i: (0, 0)),
            pl.BlockSpec(w_hid.shape, lambda i: (0, 0)),
            pl.BlockSpec(b.shape, lambda i: (0, 0)),
        ],
        out_specs=pl.BlockSpec((OUT_PAD, bm), lambda i: (0, i)),
        out_shape=jax.ShapeDtypeStruct((OUT_PAD, n_pad), jnp.float32),
        compiler_params=pltpu.CompilerParams(
            dimension_semantics=("parallel",)),
    )(xT, w_in, wa, w_hid, b)

    y3 = y3t[:2, :n].T                 # [n, 2]
    y4 = jax.nn.sigmoid(y3)            # trivially cheap in XLA; 1 kernel output
    return y4, y3


def init_params(key, in_size, e_node, dim_feature):
    d0, d1, d2 = dim_feature
    hid = 2 * in_size

    def lin(k, fan_in, fan_out):
        kw, kb = jax.random.split(k)
        w = jax.random.normal(kw, (fan_in, fan_out), jnp.float32) * 0.1
        b = jax.random.normal(kb, (1, fan_out), jnp.float32) * 0.1
        return w, b

    keys = jax.random.split(key, 10)
    p = {}
    p["we"], p["be"] = lin(keys[0], in_size, e_node)          # E_layer
    p["wa0"], p["ba0"] = lin(keys[1], e_node, in_size)        # attention class-0
    p["wa1"], p["ba1"] = lin(keys[2], e_node, in_size)        # attention class-1
    p["wg"], p["bg"] = lin(keys[3], d0, d0)                   # geneNet.linear_1
    p["wc"], p["bc"] = lin(keys[4], d1, d1)                   # cnvNet.linear_1
    p["wcl"], p["bcl"] = lin(keys[5], d2, d2)                 # clinNet.linear_1
    p["waf"], p["baf"] = lin(keys[6], d0 + d1, d0 + d1)       # Affinity_net.linear_1
    p["w1"], p["b1"] = lin(keys[7], hid, hid)                 # Net.linear_1
    p["w2"], p["b2"] = lin(keys[8], hid, hid)                 # Net.linear_2
    p["w3"], p["b3"] = lin(keys[9], hid, 2)                   # Net.linear_3
    return p


def ref_forward(x, aff, p, dim_feature):
    """Pure-JAX reference mirroring the PyTorch forward exactly."""
    d0, d1, d2 = dim_feature
    E = jnp.tanh(x @ p["we"] + p["be"])
    l0 = jnp.tanh(E @ p["wa0"] + p["ba0"])
    l1 = jnp.tanh(E @ p["wa1"] + p["ba1"])
    A = jax.nn.softmax(jnp.stack([l0, l1], axis=-1), axis=-1)[..., 1]
    middle = x * A
    gene = _elu(middle[:, :d0] @ p["wg"] + p["bg"])
    cnv = _elu(middle[:, d0:d0 + d1] @ p["wc"] + p["bc"])
    clin = _elu(middle[:, d0 + d1:] @ p["wcl"] + p["bcl"])
    fus_y1 = _elu((middle[:, :d0 + d1] @ aff) @ p["waf"] + p["baf"])
    fusion = jnp.concatenate([fus_y1, middle[:, d0 + d1:]], axis=1)
    concat = jnp.concatenate([gene, cnv, clin], axis=1)
    y1 = _elu(jnp.concatenate([concat, fusion], axis=1) @ p["w1"] + p["b1"])
    y2 = _elu(y1 @ p["w2"] + p["b2"])
    y3 = _elu(y2 @ p["w3"] + p["b3"])
    return jax.nn.sigmoid(y3), y3


if __name__ == "__main__":
    # dim_feature = (16, 8, 8) -> in_size = 32, E_node = 32, batch = 256.
    dim_feature = (16, 8, 8)
    in_size = sum(dim_feature)
    e_node = 32
    batch = 256

    key = jax.random.PRNGKey(0)
    k_x, k_aff, k_p = jax.random.split(key, 3)
    x = jax.random.normal(k_x, (batch, in_size), jnp.float32)
    affinity = jax.random.normal(k_aff, (dim_feature[0] + dim_feature[1],
                                         dim_feature[0] + dim_feature[1]),
                                 jnp.float32) * 0.1
    params = init_params(k_p, in_size, e_node, dim_feature)

    y4, y3 = net_forward(x, affinity, params, dim_feature)
    jax.block_until_ready((y4, y3))

    y4_ref, y3_ref = ref_forward(x, affinity, params, dim_feature)
    assert y4.shape == (batch, 2) and y3.shape == (batch, 2)
    assert jnp.allclose(y4, y4_ref, atol=1e-4, rtol=1e-4)
    assert jnp.allclose(y3, y3_ref, atol=1e-4, rtol=1e-4)
    print("KERNEL_OK")
</pallas_src>

<mosaic_0001>
module attributes {stable_mosaic.version = 11 : i64} {
  func.func @net_kernel(%arg0: i32, %arg1: memref<32x256xf32, #tpu.memory_space<vmem>>, %arg2: memref<160x32xf32, #tpu.memory_space<vmem>>, %arg3: memref<64x32xf32, #tpu.memory_space<vmem>>, %arg4: memref<136x64xf32, #tpu.memory_space<vmem>>, %arg5: memref<296x1xf32, #tpu.memory_space<vmem>>, %arg6: memref<8x256xf32, #tpu.memory_space<vmem>>) attributes {dimension_semantics = [#tpu.dimension_semantics<parallel>], iteration_bounds = array<i64: 1>, scalar_prefetch = 0 : i64, scratch_operands = 0 : i64, tpu.core_type = #tpu.core_type<tc>, window_params = [{transform_indices = @transform_0, window_bounds = array<i64: 32, 256>}, {pipeline_mode = #tpu.pipeline_mode<synchronous>, transform_indices = @transform_1, window_bounds = array<i64: 160, 32>}, {pipeline_mode = #tpu.pipeline_mode<synchronous>, transform_indices = @transform_2, window_bounds = array<i64: 64, 32>}, {pipeline_mode = #tpu.pipeline_mode<synchronous>, transform_indices = @transform_3, window_bounds = array<i64: 136, 64>}, {pipeline_mode = #tpu.pipeline_mode<synchronous>, transform_indices = @transform_4, window_bounds = array<i64: 296, 1>}, {transform_indices = @transform_5, window_bounds = array<i64: 8, 256>}]} {
    %c0 = arith.constant 0 : index
    %c0_0 = arith.constant 0 : index
    %0 = vector.load %arg1[%c0, %c0_0] : memref<32x256xf32, #tpu.memory_space<vmem>>, vector<32x256xf32>
    %c0_1 = arith.constant 0 : index
    %c0_2 = arith.constant 0 : index
    %1 = vector.load %arg2[%c0_1, %c0_2] : memref<160x32xf32, #tpu.memory_space<vmem>>, vector<32x32xf32>
    %cst = arith.constant dense<0.000000e+00> : vector<32x256xf32>
    %2 = tpu.matmul %1, %0, %cst {dimension_numbers = #tpu.dot_dimension_numbers<[1], [0], [0], [1], [0, 0, 1, 1], [], []>} : vector<32x32xf32>, vector<32x256xf32>, vector<32x256xf32> -> vector<32x256xf32>
    %c0_3 = arith.constant 0 : index
    %c0_4 = arith.constant 0 : index
    %3 = vector.load %arg5[%c0_3, %c0_4] : memref<296x1xf32, #tpu.memory_space<vmem>>, vector<32x1xf32>
    %4 = vector.broadcast %3 : vector<32x1xf32> to vector<32x256xf32>
    %5 = arith.addf %2, %4 : vector<32x256xf32>
    %6 = math.tanh %5 : vector<32x256xf32>
    %c0_5 = arith.constant 0 : index
    %c0_6 = arith.constant 0 : index
    %7 = vector.load %arg3[%c0_5, %c0_6] : memref<64x32xf32, #tpu.memory_space<vmem>>, vector<64x32xf32>
    %cst_7 = arith.constant dense<0.000000e+00> : vector<64x256xf32>
    %8 = tpu.matmul %7, %6, %cst_7 {dimension_numbers = #tpu.dot_dimension_numbers<[1], [0], [0], [1], [0, 0, 1, 1], [], []>} : vector<64x32xf32>, vector<32x256xf32>, vector<64x256xf32> -> vector<64x256xf32>
    %c32 = arith.constant 32 : index
    %c0_8 = arith.constant 0 : index
    %9 = vector.load %arg5[%c32, %c0_8] : memref<296x1xf32, #tpu.memory_space<vmem>>, vector<64x1xf32>
    %10 = vector.broadcast %9 : vector<64x1xf32> to vector<64x256xf32>
    %11 = arith.addf %8, %10 : vector<64x256xf32>
    %12 = math.tanh %11 : vector<64x256xf32>
    %13 = vector.extract_strided_slice %12 {offsets = [32, 0], sizes = [32, 256], strides = [1, 1]} : vector<64x256xf32> to vector<32x256xf32>
    %14 = vector.extract_strided_slice %12 {offsets = [0, 0], sizes = [32, 256], strides = [1, 1]} : vector<64x256xf32> to vector<32x256xf32>
    %15 = arith.subf %13, %14 : vector<32x256xf32>
    %16 = arith.negf %15 : vector<32x256xf32>
    %17 = math.exp %16 : vector<32x256xf32>
    %cst_9 = arith.constant 1.000000e+00 : f32
    %18 = vector.broadcast %cst_9 : f32 to vector<32x256xf32>
    %19 = arith.addf %18, %17 : vector<32x256xf32>
    %20 = arith.divf %18, %19 : vector<32x256xf32>
    %21 = arith.mulf %0, %20 : vector<32x256xf32>
    %c32_10 = arith.constant 32 : index
    %c0_11 = arith.constant 0 : index
    %22 = vector.load %arg2[%c32_10, %c0_11] : memref<160x32xf32, #tpu.memory_space<vmem>>, vector<64x32xf32>
    %cst_12 = arith.constant dense<0.000000e+00> : vector<64x256xf32>
    %23 = tpu.matmul %22, %21, %cst_12 {dimension_numbers = #tpu.dot_dimension_numbers<[1], [0], [0], [1], [0, 0, 1, 1], [], []>} : vector<64x32xf32>, vector<32x256xf32>, vector<64x256xf32> -> vector<64x256xf32>
    %c96 = arith.constant 96 : index
    %c0_13 = arith.constant 0 : index
    %24 = vector.load %arg5[%c96, %c0_13] : memref<296x1xf32, #tpu.memory_space<vmem>>, vector<64x1xf32>
    %25 = vector.broadcast %24 : vector<64x1xf32> to vector<64x256xf32>
    %26 = arith.addf %23, %25 : vector<64x256xf32>
    %cst_14 = arith.constant 0.000000e+00 : f32
    %27 = vector.broadcast %cst_14 : f32 to vector<64x256xf32>
    %28 = arith.cmpf ogt, %26, %27 : vector<64x256xf32>
    %29 = math.exp %26 : vector<64x256xf32>
    %cst_15 = arith.constant 1.000000e+00 : f32
    %30 = vector.broadcast %cst_15 : f32 to vector<64x256xf32>
    %31 = arith.subf %29, %30 : vector<64x256xf32>
    %32 = arith.select %28, %26, %31 : vector<64x256xi1>, vector<64x256xf32>
    %c0_16 = arith.constant 0 : index
    %c0_17 = arith.constant 0 : index
    %33 = vector.load %arg4[%c0_16, %c0_17] : memref<136x64xf32, #tpu.memory_space<vmem>>, vector<64x64xf32>
    %cst_18 = arith.constant dense<0.000000e+00> : vector<64x256xf32>
    %34 = tpu.matmul %33, %32, %cst_18 {dimension_numbers = #tpu.dot_dimension_numbers<[1], [0], [0], [1], [0, 0, 1, 1], [], []>} : vector<64x64xf32>, vector<64x256xf32>, vector<64x256xf32> -> vector<64x256xf32>
    %c96_19 = arith.constant 96 : index
    %c0_20 = arith.constant 0 : index
    %35 = vector.load %arg2[%c96_19, %c0_20] : memref<160x32xf32, #tpu.memory_space<vmem>>, vector<64x32xf32>
    %cst_21 = arith.constant dense<0.000000e+00> : vector<64x256xf32>
    %36 = tpu.matmul %35, %21, %cst_21 {dimension_numbers = #tpu.dot_dimension_numbers<[1], [0], [0], [1], [0, 0, 1, 1], [], []>} : vector<64x32xf32>, vector<32x256xf32>, vector<64x256xf32> -> vector<64x256xf32>
    %37 = arith.addf %34, %36 : vector<64x256xf32>
    %c160 = arith.constant 160 : index
    %c0_22 = arith.constant 0 : index
    %38 = vector.load %arg5[%c160, %c0_22] : memref<296x1xf32, #tpu.memory_space<vmem>>, vector<64x1xf32>
    %39 = vector.broadcast %38 : vector<64x1xf32> to vector<64x256xf32>
    %40 = arith.addf %37, %39 : vector<64x256xf32>
    %cst_23 = arith.constant 0.000000e+00 : f32
    %41 = vector.broadcast %cst_23 : f32 to vector<64x256xf32>
    %42 = arith.cmpf ogt, %40, %41 : vector<64x256xf32>
    %43 = math.exp %40 : vector<64x256xf32>
    %cst_24 = arith.constant 1.000000e+00 : f32
    %44 = vector.broadcast %cst_24 : f32 to vector<64x256xf32>
    %45 = arith.subf %43, %44 : vector<64x256xf32>
    %46 = arith.select %42, %40, %45 : vector<64x256xi1>, vector<64x256xf32>
    %c64 = arith.constant 64 : index
    %c0_25 = arith.constant 0 : index
    %47 = vector.load %arg4[%c64, %c0_25] : memref<136x64xf32, #tpu.memory_space<vmem>>, vector<64x64xf32>
    %cst_26 = arith.constant dense<0.000000e+00> : vector<64x256xf32>
    %48 = tpu.matmul %47, %46, %cst_26 {dimension_numbers = #tpu.dot_dimension_numbers<[1], [0], [0], [1], [0, 0, 1, 1], [], []>} : vector<64x64xf32>, vector<64x256xf32>, vector<64x256xf32> -> vector<64x256xf32>
    %c224 = arith.constant 224 : index
    %c0_27 = arith.constant 0 : index
    %49 = vector.load %arg5[%c224, %c0_27] : memref<296x1xf32, #tpu.memory_space<vmem>>, vector<64x1xf32>
    %50 = vector.broadcast %49 : vector<64x1xf32> to vector<64x256xf32>
    %51 = arith.addf %48, %50 : vector<64x256xf32>
    %cst_28 = arith.constant 0.000000e+00 : f32
    %52 = vector.broadcast %cst_28 : f32 to vector<64x256xf32>
    %53 = arith.cmpf ogt, %51, %52 : vector<64x256xf32>
    %54 = math.exp %51 : vector<64x256xf32>
    %cst_29 = arith.constant 1.000000e+00 : f32
    %55 = vector.broadcast %cst_29 : f32 to vector<64x256xf32>
    %56 = arith.subf %54, %55 : vector<64x256xf32>
    %57 = arith.select %53, %51, %56 : vector<64x256xi1>, vector<64x256xf32>
    %c128 = arith.constant 128 : index
    %c0_30 = arith.constant 0 : index
    %58 = vector.load %arg4[%c128, %c0_30] : memref<136x64xf32, #tpu.memory_space<vmem>>, vector<8x64xf32>
    %cst_31 = arith.constant dense<0.000000e+00> : vector<8x256xf32>
    %59 = tpu.matmul %58, %57, %cst_31 {dimension_numbers = #tpu.dot_dimension_numbers<[1], [0], [0], [1], [0, 0, 1, 1], [], []>} : vector<8x64xf32>, vector<64x256xf32>, vector<8x256xf32> -> vector<8x256xf32>
    %c288 = arith.constant 288 : index
    %c0_32 = arith.constant 0 : index
    %60 = vector.load %arg5[%c288, %c0_32] : memref<296x1xf32, #tpu.memory_space<vmem>>, vector<8x1xf32>
    %61 = vector.broadcast %60 : vector<8x1xf32> to vector<8x256xf32>
    %62 = arith.addf %59, %61 : vector<8x256xf32>
    %cst_33 = arith.constant 0.000000e+00 : f32
    %63 = vector.broadcast %cst_33 : f32 to vector<8x256xf32>
    %64 = arith.cmpf ogt, %62, %63 : vector<8x256xf32>
    %65 = math.exp %62 : vector<8x256xf32>
    %cst_34 = arith.constant 1.000000e+00 : f32
    %66 = vector.broadcast %cst_34 : f32 to vector<8x256xf32>
    %67 = arith.subf %65, %66 : vector<8x256xf32>
    %68 = arith.select %64, %62, %67 : vector<8x256xi1>, vector<8x256xf32>
    %c0_35 = arith.constant 0 : index
    %c0_36 = arith.constant 0 : index
    %69 = vector.load %arg6[%c0_35, %c0_36] : memref<8x256xf32, #tpu.memory_space<vmem>>, vector<8x256xf32>
    tpu.vector_store %arg6[%c0_35, %c0_36], %68 {strides = array<i32>} : memref<8x256xf32, #tpu.memory_space<vmem>>, vector<8x256xf32>,
    return
  }
  func.func @transform_0(%arg0: i32) -> (i32, i32) {
    %c0_i32 = arith.constant 0 : i32
    %c0_i32_0 = arith.constant 0 : i32
    return %c0_i32, %arg0 : i32, i32
  }
  func.func @transform_1(%arg0: i32) -> (i32, i32) {
    %c0_i32 = arith.constant 0 : i32
    %c0_i32_0 = arith.constant 0 : i32
    %c0_i32_1 = arith.constant 0 : i32
    return %c0_i32, %c0_i32_0 : i32, i32
  }
  func.func @transform_2(%arg0: i32) -> (i32, i32) {
    %c0_i32 = arith.constant 0 : i32
    %c0_i32_0 = arith.constant 0 : i32
    %c0_i32_1 = arith.constant 0 : i32
    return %c0_i32, %c0_i32_0 : i32, i32
  }
  func.func @transform_3(%arg0: i32) -> (i32, i32) {
    %c0_i32 = arith.constant 0 : i32
    %c0_i32_0 = arith.constant 0 : i32
    %c0_i32_1 = arith.constant 0 : i32
    return %c0_i32, %c0_i32_0 : i32, i32
  }
  func.func @transform_4(%arg0: i32) -> (i32, i32) {
    %c0_i32 = arith.constant 0 : i32
    %c0_i32_0 = arith.constant 0 : i32
    %c0_i32_1 = arith.constant 0 : i32
    return %c0_i32, %c0_i32_0 : i32, i32
  }
  func.func @transform_5(%arg0: i32) -> (i32, i32) {
    %c0_i32 = arith.constant 0 : i32
    %c0_i32_0 = arith.constant 0 : i32
    return %c0_i32, %arg0 : i32, i32
  }
}

</mosaic_0001>

<llo_original>
// kernel: tpu_custom_call.1
$region0: #{tpu_custom_call.1}
  #allocation0 [shape = 'u32[]', space=smem, size = 0x4, offset = 0x4, fixed_abs, tag = 'smem constant byte address 0x4 - core index']
  #allocation1 [shape = 'u32[144,128]{1,0:T(1,128)}', space=vmem, size = 0x12000, scoped, tag = 'internal scratch']
  %s0 = inlined_call_operand.vmem [shape: f32[32,256], index: 0, kind: input, shape index: {}]
  %s1 = inlined_call_operand.vmem [shape: f32[160,32], index: 1, kind: input, shape index: {}]
  %s2 = inlined_call_operand.vmem [shape: f32[64,32], index: 2, kind: input, shape index: {}]
  %s3 = inlined_call_operand.vmem [shape: f32[136,64], index: 3, kind: input, shape index: {}]
  %s4 = inlined_call_operand.vmem [shape: f32[296,1], index: 4, kind: input, shape index: {}]
  %s5 = inlined_call_operand.hbm [shape: f32[8,256], index: 5, kind: output, shape index: {}]
  %s6 = sld [smem:[#allocation0]]
  $region30: #{tpu_custom_call.1} parent=0
    _
  %s8 = ssub.s32 1, %s6
  %s9 = scalar_select 0, %s8, %s6
  $region1: #{tpu_custom_call.1} parent=0
    #allocation2 [shape = 'u8[8192]{0}', space=vmem, size = 0x2000, scoped, tag = 'output window, operand 0, single buffered']
    #allocation3 [shape = 's32[1]{0}', space=sflag, size = 0x4, scoped, tag = 'scoped memory for tpu_custom_call.1']
    %10 = vsyncpa [#allocation3], 0
    // Predicated region
    $region2: #{tpu_custom_call.1} parent=1 // pred_check
      _
    $region3: #{tpu_custom_call.1} parent=1 // pred_check_branch
      %12 = sbr.rel (0) target = $region5
    $region4: #{tpu_custom_call.1} parent=1 // pred_region
      _
    $region5: #{tpu_custom_call.1} parent=1 // pred_fallthru
      _
    // Predicated region
    $region6: #{tpu_custom_call.1} parent=1 // pred_check
      _
    $region7: #{tpu_custom_call.1} parent=1 // pred_check_branch
      %14 = sbr.rel (0) target = $region9
    $region8: #{tpu_custom_call.1} parent=1 // pred_region
      _
    $region9: #{tpu_custom_call.1} parent=1 // pred_fallthru
      _
    // Predicated region
    $region10: #{tpu_custom_call.1} parent=1 // pred_check
      _
    $region11: #{tpu_custom_call.1} parent=1 // pred_check_branch
      %16 = sbr.rel (0) target = $region13
    $region12: #{tpu_custom_call.1} parent=1 // pred_region
      _
    $region13: #{tpu_custom_call.1} parent=1 // pred_fallthru
      _
    // Predicated region
    $region14: #{tpu_custom_call.1} parent=1 // pred_check
      _
    $region15: #{tpu_custom_call.1} parent=1 // pred_check_branch
      %18 = sbr.rel (0) target = $region17
    $region16: #{tpu_custom_call.1} parent=1 // pred_region
      _
    $region17: #{tpu_custom_call.1} parent=1 // pred_fallthru
      _
    // Predicated region
    $region18: #{tpu_custom_call.1} parent=1 // pred_check
      _
    $region19: #{tpu_custom_call.1} parent=1 // pred_check_branch
      %20 = sbr.rel (0) target = $region21
    $region20: #{tpu_custom_call.1} parent=1 // pred_region
      _
    $region21: #{tpu_custom_call.1} parent=1 // pred_fallthru
      _
    %v21 = vld [vmem:[%s0] sm:$0xff]
    %v22 = vld [vmem:[%s0 + $0x8] sm:$0xff]
    %v23 = vld [vmem:[%s0 + $0x10] sm:$0xff]
    %v24 = vld [vmem:[%s0 + $0x18] sm:$0xff]
    %v25 = vld [vmem:[%s0 + $0x20] sm:$0xff]
    %v26 = vld [vmem:[%s0 + $0x28] sm:$0xff]
    %v27 = vld [vmem:[%s0 + $0x30] sm:$0xff]
    %v28 = vld [vmem:[%s0 + $0x38] sm:$0xff]
    %v29 = vld [vmem:[%s1] sm:$0xff]
    %v30 = vld [vmem:[%s1 + $0x8] sm:$0xff]
    %v31 = vld [vmem:[%s1 + $0x10] sm:$0xff]
    %v32 = vld [vmem:[%s1 + $0x18] sm:$0xff]
    %v33 = vld [vmem:[%s4] sm:$0xff]
    %v34 = vld [vmem:[%s4 + $0x8] sm:$0xff]
    %v35 = vld [vmem:[%s4 + $0x10] sm:$0xff]
    %v36 = vld [vmem:[%s4 + $0x18] sm:$0xff]
    %38 = vset.pattern.permute.xlu0 0
    %39 = vperm.xlu0 %38, %v33
    %v40 = vpop.permute.xlu0 %39
    %43 = vset.pattern.permute.xlu0 0
    %44 = vperm.xlu0 %43, %v34
    %v45 = vpop.permute.xlu0 %44
    %48 = vset.pattern.permute.xlu0 0
    %49 = vperm.xlu0 %48, %v35
    %v50 = vpop.permute.xlu0 %49
    %53 = vset.pattern.permute.xlu0 0
    %54 = vperm.xlu0 %53, %v36
    %v55 = vpop.permute.xlu0 %54
    %vm57 = vcmask 261120
    %v59 = vsel %vm57, %v29, 0
    %v62 = vsel %vm57, %v30, 0
    %v65 = vsel %vm57, %v31, 0
    %v68 = vsel %vm57, %v32, 0
    %70 = vmatprep.subr.mxu0 %v22
    %71 = vmatpush1.msra.mxu0 %v21
    %72 = vmatprep.subr.mxu0 %v24
    %73 = vmatpush1.msra.mxu0 %v23
    %74 = vmatprep.subr.mxu0 %v26
    %75 = vmatpush1.msra.mxu0 %v25
    %76 = vmatprep.subr.mxu0 %v28
    %77 = vmatpush1.msra.mxu0 %v27
    %78 = vmatprep.subr.mxu0 0.0
    %79 = vmatpush1.msra.mxu0 0.0
    %80 = vmatprep.subr.mxu0 0.0
    %81 = vmatpush1.msra.mxu0 0.0
    %82 = vmatprep.subr.mxu0 0.0
    %83 = vmatpush1.msra.mxu0 0.0
    %84 = vmatprep.subr.mxu0 0.0
    %85 = vmatpush1.msra.mxu0 0.0
    %86 = vmatprep.subr.mxu0 0.0
    %87 = vmatpush1.msra.mxu0 0.0
    %88 = vmatprep.subr.mxu0 0.0
    %89 = vmatpush1.msra.mxu0 0.0
    %90 = vmatprep.subr.mxu0 0.0
    %91 = vmatpush1.msra.mxu0 0.0
    %92 = vmatprep.subr.mxu0 0.0
    %93 = vmatpush1.msra.mxu0 0.0
    %94 = vmatprep.subr.mxu0 0.0
    %95 = vmatpush1.msra.mxu0 0.0
    %96 = vmatprep.subr.mxu0 0.0
    %97 = vmatpush1.msra.mxu0 0.0
    %98 = vmatprep.subr.mxu0 0.0
    %99 = vmatpush1.msra.mxu0 0.0
    %100 = vmatprep.subr.mxu0 0.0
    %101 = vmatpush1.msra.mxu0 0.0
    %102 = vmatprep.subr.mxu0 0.0
    %103 = vmatpush1.msra.mxu0 0.0
    %104 = vmatprep.subr.mxu0 0.0
    %105 = vmatpush1.msra.mxu0 0.0
    %106 = vmatprep.subr.mxu0 0.0
    %107 = vmatpush1.msra.mxu0 0.0
    %108 = vmatprep.subr.mxu0 0.0
    %109 = vmatpush1.msra.mxu0 0.0
    %110 = vmatprep.subr.mxu0 0.0
    %111 = vmatpush1.msra.mxu0 0.0
    %112 = vmatprep.subr.mxu0 0.0
    %113 = vmatpush1.msra.mxu0 0.0
    %114 = vmatprep.subr.mxu0 0.0
    %115 = vmatpush1.msra.mxu0 0.0
    %116 = vmatprep.subr.mxu0 0.0
    %117 = vmatpush1.msra.mxu0 0.0
    %118 = vmatprep.subr.mxu0 0.0
    %119 = vmatpush1.msra.mxu0 0.0
    %120 = vmatprep.subr.mxu0 0.0
    %121 = vmatpush1.msra.mxu0 0.0
    %122 = vmatprep.subr.mxu0 0.0
    %123 = vmatpush1.msra.mxu0 0.0
    %124 = vmatprep.subr.mxu0 0.0
    %125 = vmatpush1.msra.mxu0 0.0
    %126 = vmatprep.subr.mxu0 0.0
    %127 = vmatpush1.msra.mxu0 0.0
    %128 = vmatprep.subr.mxu0 0.0
    %129 = vmatpush1.msra.mxu0 0.0
    %130 = vmatprep.subr.mxu0 0.0
    %131 = vmatpush1.msra.mxu0 0.0
    %132 = vmatprep.subr.mxu0 0.0
    %133 = vmatpush1.msra.mxu0 0.0
    %134 = vmatprep.mubr.f32.mxu0 0.0
    %135 = vmatmul.mubr.f32.gmra.mrb[0].mxu0 %v59
    %v136 = vpop.f32.mrb[0].mxu0
    %v137 = vadd.f32 %v40, %v136
    %v138 = vpop.f32.mrb[0].mxu0
    %v139 = vadd.f32 %v40, %v138
    %140 = vmatprep.mubr.f32.mxu0 0.0
    %141 = vmatmul.mubr.f32.gmra.mrb[0].mxu0 %v62
    %v142 = vpop.f32.mrb[0].mxu0
    %v143 = vadd.f32 %v45, %v142
    %v144 = vpop.f32.mrb[0].mxu0
    %v145 = vadd.f32 %v45, %v144
    %146 = vmatprep.mubr.f32.mxu0 0.0
    %147 = vmatmul.mubr.f32.gmra.mrb[0].mxu0 %v65
    %v148 = vpop.f32.mrb[0].mxu0
    %v149 = vadd.f32 %v50, %v148
    %v150 = vpop.f32.mrb[0].mxu0
    %v151 = vadd.f32 %v50, %v150
    %152 = vmatprep.mubr.f32.mxu0 0.0
    %153 = vmatmul.mubr.f32.gmra.mrb[0].mxu0 %v68
    %v154 = vpop.f32.mrb[0].mxu0
    %v155 = vadd.f32 %v55, %v154
    %v156 = vpop.f32.mrb[0].mxu0
    %v157 = vadd.f32 %v55, %v156
    %158 = vdwg.mxu0
    %v159 = vtanh.pop %v137
    %v160 = vtanh.pop %v139
    %v161 = vtanh.pop %v143
    %v162 = vtanh.pop %v145
    %v163 = vtanh.pop %v149
    %v164 = vtanh.pop %v151
    %v165 = vtanh.pop %v155
    %v166 = vtanh.pop %v157
    %v167 = vld [vmem:[%s2] sm:$0xff]
    %v168 = vld [vmem:[%s2 + $0x8] sm:$0xff]
    %v169 = vld [vmem:[%s2 + $0x10] sm:$0xff]
    %v170 = vld [vmem:[%s2 + $0x18] sm:$0xff]
    %v171 = vld [vmem:[%s2 + $0x20] sm:$0xff]
    %v172 = vld [vmem:[%s2 + $0x28] sm:$0xff]
    %v173 = vld [vmem:[%s2 + $0x30] sm:$0xff]
    %v174 = vld [vmem:[%s2 + $0x38] sm:$0xff]
    %v175 = vld [vmem:[%s4 + $0x20] sm:$0xff]
    %v176 = vld [vmem:[%s4 + $0x28] sm:$0xff]
    %v177 = vld [vmem:[%s4 + $0x30] sm:$0xff]
    %v178 = vld [vmem:[%s4 + $0x38] sm:$0xff]
    %v179 = vld [vmem:[%s4 + $0x40] sm:$0xff]
    %v180 = vld [vmem:[%s4 + $0x48] sm:$0xff]
    %v181 = vld [vmem:[%s4 + $0x50] sm:$0xff]
    %v182 = vld [vmem:[%s4 + $0x58] sm:$0xff]
    %184 = vset.pattern.permute.xlu0 0
    %185 = vperm.xlu0 %184, %v175
    %v186 = vpop.permute.xlu0 %185
    %189 = vset.pattern.permute.xlu0 0
    %190 = vperm.xlu0 %189, %v176
    %v191 = vpop.permute.xlu0 %190
    %194 = vset.pattern.permute.xlu0 0
    %195 = vperm.xlu0 %194, %v177
    %v196 = vpop.permute.xlu0 %195
    %199 = vset.pattern.permute.xlu0 0
    %200 = vperm.xlu0 %199, %v178
    %v201 = vpop.permute.xlu0 %200
    %204 = vset.pattern.permute.xlu0 0
    %205 = vperm.xlu0 %204, %v179
    %v206 = vpop.permute.xlu0 %205
    %209 = vset.pattern.permute.xlu0 0
    %210 = vperm.xlu0 %209, %v180
    %v211 = vpop.permute.xlu0 %210
    %214 = vset.pattern.permute.xlu0 0
    %215 = vperm.xlu0 %214, %v181
    %v216 = vpop.permute.xlu0 %215
    %219 = vset.pattern.permute.xlu0 0
    %220 = vperm.xlu0 %219, %v182
    %v221 = vpop.permute.xlu0 %220
    %v224 = vsel %vm57, %v167, 0
    %v227 = vsel %vm57, %v168, 0
    %v230 = vsel %vm57, %v169, 0
    %v233 = vsel %vm57, %v170, 0
    %v236 = vsel %vm57, %v171, 0
    %v239 = vsel %vm57, %v172, 0
    %v242 = vsel %vm57, %v173, 0
    %v245 = vsel %vm57, %v174, 0
    %247 = vmatprep.subr.mxu0 %v160
    %248 = vmatpush1.msra.mxu0 %v159
    %249 = vmatprep.subr.mxu0 %v162
    %250 = vmatpush1.msra.mxu0 %v161
    %251 = vmatprep.subr.mxu0 %v164
    %252 = vmatpush1.msra.mxu0 %v163
    %253 = vmatprep.subr.mxu0 %v166
    %254 = vmatpush1.msra.mxu0 %v165
    %255 = vmatprep.subr.mxu0 0.0
    %256 = vmatpush1.msra.mxu0 0.0
    %257 = vmatprep.subr.mxu0 0.0
    %258 = vmatpush1.msra.mxu0 0.0
    %259 = vmatprep.subr.mxu0 0.0
    %260 = vmatpush1.msra.mxu0 0.0
    %261 = vmatprep.subr.mxu0 0.0
    %262 = vmatpush1.msra.mxu0 0.0
    %263 = vmatprep.subr.mxu0 0.0
    %264 = vmatpush1.msra.mxu0 0.0
    %265 = vmatprep.subr.mxu0 0.0
    %266 = vmatpush1.msra.mxu0 0.0
    %267 = vmatprep.subr.mxu0 0.0
    %268 = vmatpush1.msra.mxu0 0.0
    %269 = vmatprep.subr.mxu0 0.0
    %270 = vmatpush1.msra.mxu0 0.0
    %271 = vmatprep.subr.mxu0 0.0
    %272 = vmatpush1.msra.mxu0 0.0
    %273 = vmatprep.subr.mxu0 0.0
    %274 = vmatpush1.msra.mxu0 0.0
    %275 = vmatprep.subr.mxu0 0.0
    %276 = vmatpush1.msra.mxu0 0.0
    %277 = vmatprep.subr.mxu0 0.0
    %278 = vmatpush1.msra.mxu0 0.0
    %279 = vmatprep.subr.mxu0 0.0
    %280 = vmatpush1.msra.mxu0 0.0
    %281 = vmatprep.subr.mxu0 0.0
    %282 = vmatpush1.msra.mxu0 0.0
    %283 = vmatprep.subr.mxu0 0.0
    %284 = vmatpush1.msra.mxu0 0.0
    %285 = vmatprep.subr.mxu0 0.0
    %286 = vmatpush1.msra.mxu0 0.0
    %287 = vmatprep.subr.mxu0 0.0
    %288 = vmatpush1.msra.mxu0 0.0
    %289 = vmatprep.subr.mxu0 0.0
    %290 = vmatpush1.msra.mxu0 0.0
    %291 = vmatprep.subr.mxu0 0.0
    %292 = vmatpush1.msra.mxu0 0.0
    %293 = vmatprep.subr.mxu0 0.0
    %294 = vmatpush1.msra.mxu0 0.0
    %295 = vmatprep.subr.mxu0 0.0
    %296 = vmatpush1.msra.mxu0 0.0
    %297 = vmatprep.subr.mxu0 0.0
    %298 = vmatpush1.msra.mxu0 0.0
    %299 = vmatprep.subr.mxu0 0.0
    %300 = vmatpush1.msra.mxu0 0.0
    %301 = vmatprep.subr.mxu0 0.0
    %302 = vmatpush1.msra.mxu0 0.0
    %303 = vmatprep.subr.mxu0 0.0
    %304 = vmatpush1.msra.mxu0 0.0
    %305 = vmatprep.subr.mxu0 0.0
    %306 = vmatpush1.msra.mxu0 0.0
    %307 = vmatprep.subr.mxu0 0.0
    %308 = vmatpush1.msra.mxu0 0.0
    %309 = vmatprep.subr.mxu0 0.0
    %310 = vmatpush1.msra.mxu0 0.0
    %311 = vmatprep.mubr.f32.mxu0 0.0
    %312 = vmatmul.mubr.f32.gmra.mrb[0].mxu0 %v224
    %v313 = vpop.f32.mrb[0].mxu0
    %v314 = vadd.f32 %v186, %v313
    %v315 = vpop.f32.mrb[0].mxu0
    %v316 = vadd.f32 %v186, %v315
    %317 = vmatprep.mubr.f32.mxu0 0.0
    %318 = vmatmul.mubr.f32.gmra.mrb[0].mxu0 %v227
    %v319 = vpop.f32.mrb[0].mxu0
    %v320 = vadd.f32 %v191, %v319
    %v321 = vpop.f32.mrb[0].mxu0
    %v322 = vadd.f32 %v191, %v321
    %323 = vmatprep.mubr.f32.mxu0 0.0
    %324 = vmatmul.mubr.f32.gmra.mrb[0].mxu0 %v230
    %v325 = vpop.f32.mrb[0].mxu0
    %v326 = vadd.f32 %v196, %v325
    %v327 = vpop.f32.mrb[0].mxu0
    %v328 = vadd.f32 %v196, %v327
    %329 = vmatprep.mubr.f32.mxu0 0.0
    %330 = vmatmul.mubr.f32.gmra.mrb[0].mxu0 %v233
    %v331 = vpop.f32.mrb[0].mxu0
    %v332 = vadd.f32 %v201, %v331
    %v333 = vpop.f32.mrb[0].mxu0
    %v334 = vadd.f32 %v201, %v333
    %335 = vmatprep.mubr.f32.mxu0 0.0
    %336 = vmatmul.mubr.f32.gmra.mrb[0].mxu0 %v236
    %v337 = vpop.f32.mrb[0].mxu0
    %v338 = vadd.f32 %v206, %v337
    %v339 = vpop.f32.mrb[0].mxu0
    %v340 = vadd.f32 %v206, %v339
    %341 = vmatprep.mubr.f32.mxu0 0.0
    %342 = vmatmul.mubr.f32.gmra.mrb[0].mxu0 %v239
    %v343 = vpop.f32.mrb[0].mxu0
    %v344 = vadd.f32 %v211, %v343
    %v345 = vpop.f32.mrb[0].mxu0
    %v346 = vadd.f32 %v211, %v345
    %347 = vmatprep.mubr.f32.mxu0 0.0
    %348 = vmatmul.mubr.f32.gmra.mrb[0].mxu0 %v242
    %v349 = vpop.f32.mrb[0].mxu0
    %v350 = vadd.f32 %v216, %v349
    %v351 = vpop.f32.mrb[0].mxu0
    %v352 = vadd.f32 %v216, %v351
    %353 = vmatprep.mubr.f32.mxu0 0.0
    %354 = vmatmul.mubr.f32.gmra.mrb[0].mxu0 %v245
    %v355 = vpop.f32.mrb[0].mxu0
    %v356 = vadd.f32 %v221, %v355
    %v357 = vpop.f32.mrb[0].mxu0
    %v358 = vadd.f32 %v221, %v357
    %359 = vdwg.mxu0
    %v360 = vtanh.pop %v314
    %v361 = vtanh.pop %v316
    %v362 = vtanh.pop %v320
    %v363 = vtanh.pop %v322
    %v364 = vtanh.pop %v326
    %v365 = vtanh.pop %v328
    %v366 = vtanh.pop %v332
    %v367 = vtanh.pop %v334
    %v368 = vtanh.pop %v338
    %v369 = vtanh.pop %v340
    %v370 = vtanh.pop %v344
    %v371 = vtanh.pop %v346
    %v372 = vtanh.pop %v350
    %v373 = vtanh.pop %v352
    %v374 = vtanh.pop %v356
    %v375 = vtanh.pop %v358
    %v376 = vsub.f32 %v368, %v360
    %v377 = vsub.f32 %v369, %v361
    %v378 = vsub.f32 %v370, %v362
    %v379 = vsub.f32 %v371, %v363
    %v380 = vsub.f32 %v372, %v364
    %v381 = vsub.f32 %v373, %v365
    %v382 = vsub.f32 %v374, %v366
    %v383 = vsub.f32 %v375, %v367
    %v384 = vxor.u32 %v376, 2147483648
    %v385 = vxor.u32 %v377, 2147483648
    %v386 = vxor.u32 %v378, 2147483648
    %v387 = vxor.u32 %v379, 2147483648
    %v388 = vxor.u32 %v380, 2147483648
    %v389 = vxor.u32 %v381, 2147483648
    %v390 = vxor.u32 %v382, 2147483648
    %v391 = vxor.u32 %v383, 2147483648
    %v392 = vmul.f32 %v384, 1.442695
    %v393 = vpow.pop %v392
    %v394 = vmul.f32 %v385, 1.442695
    %v395 = vpow.pop %v394
    %v396 = vmul.f32 %v386, 1.442695
    %v397 = vpow.pop %v396
    %v398 = vmul.f32 %v387, 1.442695
    %v399 = vpow.pop %v398
    %v400 = vmul.f32 %v388, 1.442695
    %v401 = vpow.pop %v400
    %v402 = vmul.f32 %v389, 1.442695
    %v403 = vpow.pop %v402
    %v404 = vmul.f32 %v390, 1.442695
    %v405 = vpow.pop %v404
    %v406 = vmul.f32 %v391, 1.442695
    %v407 = vpow.pop %v406
    %v408 = vadd.f32 %v393, 1.0
    %v409 = vadd.f32 %v395, 1.0
    %v410 = vadd.f32 %v397, 1.0
    %v411 = vadd.f32 %v399, 1.0
    %v412 = vadd.f32 %v401, 1.0
    %v413 = vadd.f32 %v403, 1.0
    %v414 = vadd.f32 %v405, 1.0
    %v415 = vadd.f32 %v407, 1.0
    %v416 = vrcp.pop %v408
    %v417 = vmul.f32 1.0, %v416
    %v418 = vrcp.pop %v409
    %v419 = vmul.f32 1.0, %v418
    %v420 = vrcp.pop %v410
    %v421 = vmul.f32 1.0, %v420
    %v422 = vrcp.pop %v411
    %v423 = vmul.f32 1.0, %v422
    %v424 = vrcp.pop %v412
    %v425 = vmul.f32 1.0, %v424
    %v426 = vrcp.pop %v413
    %v427 = vmul.f32 1.0, %v426
    %v428 = vrcp.pop %v414
    %v429 = vmul.f32 1.0, %v428
    %v430 = vrcp.pop %v415
    %v431 = vmul.f32 1.0, %v430
    %v432 = vmul.f32 %v21, %v417
    %v433 = vmul.f32 %v22, %v419
    %v434 = vmul.f32 %v23, %v421
    %v435 = vmul.f32 %v24, %v423
    %v436 = vmul.f32 %v25, %v425
    %v437 = vmul.f32 %v26, %v427
    %v438 = vmul.f32 %v27, %v429
    %v439 = vmul.f32 %v28, %v431
    %v440 = vld [vmem:[%s1 + $0x20] sm:$0xff]
    %v441 = vld [vmem:[%s1 + $0x28] sm:$0xff]
    %v442 = vld [vmem:[%s1 + $0x30] sm:$0xff]
    %v443 = vld [vmem:[%s1 + $0x38] sm:$0xff]
    %v444 = vld [vmem:[%s1 + $0x40] sm:$0xff]
    %v445 = vld [vmem:[%s1 + $0x48] sm:$0xff]
    %v446 = vld [vmem:[%s1 + $0x50] sm:$0xff]
    %v447 = vld [vmem:[%s1 + $0x58] sm:$0xff]
    %v448 = vld [vmem:[%s4 + $0x60] sm:$0xff]
    %v449 = vld [vmem:[%s4 + $0x68] sm:$0xff]
    %v450 = vld [vmem:[%s4 + $0x70] sm:$0xff]
    %v451 = vld [vmem:[%s4 + $0x78] sm:$0xff]
    %v452 = vld [vmem:[%s4 + $0x80] sm:$0xff]
    %v453 = vld [vmem:[%s4 + $0x88] sm:$0xff]
    %v454 = vld [vmem:[%s4 + $0x90] sm:$0xff]
    %v455 = vld [vmem:[%s4 + $0x98] sm:$0xff]
    %457 = vset.pattern.permute.xlu0 0
    %458 = vperm.xlu0 %457, %v448
    %v459 = vpop.permute.xlu0 %458
    %462 = vset.pattern.permute.xlu0 0
    %463 = vperm.xlu0 %462, %v449
    %v464 = vpop.permute.xlu0 %463
    %467 = vset.pattern.permute.xlu0 0
    %468 = vperm.xlu0 %467, %v450
    %v469 = vpop.permute.xlu0 %468
    %472 = vset.pattern.permute.xlu0 0
    %473 = vperm.xlu0 %472, %v451
    %v474 = vpop.permute.xlu0 %473
    %477 = vset.pattern.permute.xlu0 0
    %478 = vperm.xlu0 %477, %v452
    %v479 = vpop.permute.xlu0 %478
    %482 = vset.pattern.permute.xlu0 0
    %483 = vperm.xlu0 %482, %v453
    %v484 = vpop.permute.xlu0 %483
    %487 = vset.pattern.permute.xlu0 0
    %488 = vperm.xlu0 %487, %v454
    %v489 = vpop.permute.xlu0 %488
    %492 = vset.pattern.permute.xlu0 0
    %493 = vperm.xlu0 %492, %v455
    %v494 = vpop.permute.xlu0 %493
    %v497 = vsel %vm57, %v440, 0
    %v500 = vsel %vm57, %v441, 0
    %v503 = vsel %vm57, %v442, 0
    %v506 = vsel %vm57, %v443, 0
    %v509 = vsel %vm57, %v444, 0
    %v512 = vsel %vm57, %v445, 0
    %v515 = vsel %vm57, %v446, 0
    %v518 = vsel %vm57, %v447, 0
    %520 = vmatprep.subr.mxu0 %v433
    %521 = vmatpush1.msra.mxu0 %v432
    %522 = vmatprep.subr.mxu0 %v435
    %523 = vmatpush1.msra.mxu0 %v434
    %524 = vmatprep.subr.mxu0 %v437
    %525 = vmatpush1.msra.mxu0 %v436
    %526 = vmatprep.subr.mxu0 %v439
    %527 = vmatpush1.msra.mxu0 %v438
    %528 = vmatprep.subr.mxu0 0.0
    %529 = vmatpush1.msra.mxu0 0.0
    %530 = vmatprep.subr.mxu0 0.0
    %531 = vmatpush1.msra.mxu0 0.0
    %532 = vmatprep.subr.mxu0 0.0
    %533 = vmatpush1.msra.mxu0 0.0
    %534 = vmatprep.subr.mxu0 0.0
    %535 = vmatpush1.msra.mxu0 0.0
    %536 = vmatprep.subr.mxu0 0.0
    %537 = vmatpush1.msra.mxu0 0.0
    %538 = vmatprep.subr.mxu0 0.0
    %539 = vmatpush1.msra.mxu0 0.0
    %540 = vmatprep.subr.mxu0 0.0
    %541 = vmatpush1.msra.mxu0 0.0
    %542 = vmatprep.subr.mxu0 0.0
    %543 = vmatpush1.msra.mxu0 0.0
    %544 = vmatprep.subr.mxu0 0.0
    %545 = vmatpush1.msra.mxu0 0.0
    %546 = vmatprep.subr.mxu0 0.0
    %547 = vmatpush1.msra.mxu0 0.0
    %548 = vmatprep.subr.mxu0 0.0
    %549 = vmatpush1.msra.mxu0 0.0
    %550 = vmatprep.subr.mxu0 0.0
    %551 = vmatpush1.msra.mxu0 0.0
    %552 = vmatprep.subr.mxu0 0.0
    %553 = vmatpush1.msra.mxu0 0.0
    %554 = vmatprep.subr.mxu0 0.0
    %555 = vmatpush1.msra.mxu0 0.0
    %556 = vmatprep.subr.mxu0 0.0
    %557 = vmatpush1.msra.mxu0 0.0
    %558 = vmatprep.subr.mxu0 0.0
    %559 = vmatpush1.msra.mxu0 0.0
    %560 = vmatprep.subr.mxu0 0.0
    %561 = vmatpush1.msra.mxu0 0.0
    %562 = vmatprep.subr.mxu0 0.0
    %563 = vmatpush1.msra.mxu0 0.0
    %564 = vmatprep.subr.mxu0 0.0
    %565 = vmatpush1.msra.mxu0 0.0
    %566 = vmatprep.subr.mxu0 0.0
    %567 = vmatpush1.msra.mxu0 0.0
    %568 = vmatprep.subr.mxu0 0.0
    %569 = vmatpush1.msra.mxu0 0.0
    %570 = vmatprep.subr.mxu0 0.0
    %571 = vmatpush1.msra.mxu0 0.0
    %572 = vmatprep.subr.mxu0 0.0
    %573 = vmatpush1.msra.mxu0 0.0
    %574 = vmatprep.subr.mxu0 0.0
    %575 = vmatpush1.msra.mxu0 0.0
    %576 = vmatprep.subr.mxu0 0.0
    %577 = vmatpush1.msra.mxu0 0.0
    %578 = vmatprep.subr.mxu0 0.0
    %579 = vmatpush1.msra.mxu0 0.0
    %580 = vmatprep.subr.mxu0 0.0
    %581 = vmatpush1.msra.mxu0 0.0
    %582 = vmatprep.subr.mxu0 0.0
    %583 = vmatpush1.msra.mxu0 0.0
    %584 = vmatprep.mubr.f32.mxu0 0.0
    %585 = vmatmul.mubr.f32.gmra.mrb[0].mxu0 %v497
    %v586 = vpop.f32.mrb[0].mxu0
    %v587 = vadd.f32 %v459, %v586
    %v588 = vpop.f32.mrb[0].mxu0
    %v589 = vadd.f32 %v459, %v588
    %590 = vmatprep.mubr.f32.mxu0 0.0
    %591 = vmatmul.mubr.f32.gmra.mrb[0].mxu0 %v500
    %v592 = vpop.f32.mrb[0].mxu0
    %v593 = vadd.f32 %v464, %v592
    %v594 = vpop.f32.mrb[0].mxu0
    %v595 = vadd.f32 %v464, %v594
    %596 = vmatprep.mubr.f32.mxu0 0.0
    %597 = vmatmul.mubr.f32.gmra.mrb[0].mxu0 %v503
    %v598 = vpop.f32.mrb[0].mxu0
    %v599 = vadd.f32 %v469, %v598
    %v600 = vpop.f32.mrb[0].mxu0
    %v601 = vadd.f32 %v469, %v600
    %602 = vmatprep.mubr.f32.mxu0 0.0
    %603 = vmatmul.mubr.f32.gmra.mrb[0].mxu0 %v506
    %v604 = vpop.f32.mrb[0].mxu0
    %v605 = vadd.f32 %v474, %v604
    %v606 = vpop.f32.mrb[0].mxu0
    %v607 = vadd.f32 %v474, %v606
    %608 = vmatprep.mubr.f32.mxu0 0.0
    %609 = vmatmul.mubr.f32.gmra.mrb[0].mxu0 %v509
    %v610 = vpop.f32.mrb[0].mxu0
    %v611 = vadd.f32 %v479, %v610
    %v612 = vpop.f32.mrb[0].mxu0
    %v613 = vadd.f32 %v479, %v612
    %614 = vmatprep.mubr.f32.mxu0 0.0
    %615 = vmatmul.mubr.f32.gmra.mrb[0].mxu0 %v512
    %v616 = vpop.f32.mrb[0].mxu0
    %v617 = vadd.f32 %v484, %v616
    %v618 = vpop.f32.mrb[0].mxu0
    %v619 = vadd.f32 %v484, %v618
    %620 = vmatprep.mubr.f32.mxu0 0.0
    %621 = vmatmul.mubr.f32.gmra.mrb[0].mxu0 %v515
    %v622 = vpop.f32.mrb[0].mxu0
    %v623 = vadd.f32 %v489, %v622
    %v624 = vpop.f32.mrb[0].mxu0
    %v625 = vadd.f32 %v489, %v624
    %626 = vmatprep.mubr.f32.mxu0 0.0
    %627 = vmatmul.mubr.f32.gmra.mrb[0].mxu0 %v518
    %v628 = vpop.f32.mrb[0].mxu0
    %v629 = vadd.f32 %v494, %v628
    %v630 = vpop.f32.mrb[0].mxu0
    %v631 = vadd.f32 %v494, %v630
    %632 = vdwg.mxu0
    %vm633 = vcmp.gt.f32.partialorder %v587, 0.0
    %vm634 = vcmp.gt.f32.partialorder %v589, 0.0
    %vm635 = vcmp.gt.f32.partialorder %v593, 0.0
    %vm636 = vcmp.gt.f32.partialorder %v595, 0.0
    %vm637 = vcmp.gt.f32.partialorder %v599, 0.0
    %vm638 = vcmp.gt.f32.partialorder %v601, 0.0
    %vm639 = vcmp.gt.f32.partialorder %v605, 0.0
    %vm640 = vcmp.gt.f32.partialorder %v607, 0.0
    %vm641 = vcmp.gt.f32.partialorder %v611, 0.0
    %vm642 = vcmp.gt.f32.partialorder %v613, 0.0
    %vm643 = vcmp.gt.f32.partialorder %v617, 0.0
    %vm644 = vcmp.gt.f32.partialorder %v619, 0.0
    %vm645 = vcmp.gt.f32.partialorder %v623, 0.0
    %vm646 = vcmp.gt.f32.partialorder %v625, 0.0
    %vm647 = vcmp.gt.f32.partialorder %v629, 0.0
    %vm648 = vcmp.gt.f32.partialorder %v631, 0.0
    %v649 = vmul.f32 %v587, 1.442695
    %v650 = vpow.pop %v649
    %v651 = vmul.f32 %v589, 1.442695
    %v652 = vpow.pop %v651
    %v653 = vmul.f32 %v593, 1.442695
    %v654 = vpow.pop %v653
    %v655 = vmul.f32 %v595, 1.442695
    %v656 = vpow.pop %v655
    %v657 = vmul.f32 %v599, 1.442695
    %v658 = vpow.pop %v657
    %v659 = vmul.f32 %v601, 1.442695
    %v660 = vpow.pop %v659
    %v661 = vmul.f32 %v605, 1.442695
    %v662 = vpow.pop %v661
    %v663 = vmul.f32 %v607, 1.442695
    %v664 = vpow.pop %v663
    %v665 = vmul.f32 %v611, 1.442695
    %v666 = vpow.pop %v665
    %v667 = vmul.f32 %v613, 1.442695
    %v668 = vpow.pop %v667
    %v669 = vmul.f32 %v617, 1.442695
    %v670 = vpow.pop %v669
    %v671 = vmul.f32 %v619, 1.442695
    %v672 = vpow.pop %v671
    %v673 = vmul.f32 %v623, 1.442695
    %v674 = vpow.pop %v673
    %v675 = vmul.f32 %v625, 1.442695
    %v676 = vpow.pop %v675
    %v677 = vmul.f32 %v629, 1.442695
    %v678 = vpow.pop %v677
    %v679 = vmul.f32 %v631, 1.442695
    %v680 = vpow.pop %v679
    %v681 = vsub.f32 %v650, 1.0
    %v682 = vsub.f32 %v652, 1.0
    %v683 = vsub.f32 %v654, 1.0
    %v684 = vsub.f32 %v656, 1.0
    %v685 = vsub.f32 %v658, 1.0
    %v686 = vsub.f32 %v660, 1.0
    %v687 = vsub.f32 %v662, 1.0
    %v688 = vsub.f32 %v664, 1.0
    %v689 = vsub.f32 %v666, 1.0
    %v690 = vsub.f32 %v668, 1.0
    %v691 = vsub.f32 %v670, 1.0
    %v692 = vsub.f32 %v672, 1.0
    %v693 = vsub.f32 %v674, 1.0
    %v694 = vsub.f32 %v676, 1.0
    %v695 = vsub.f32 %v678, 1.0
    %v696 = vsub.f32 %v680, 1.0
    %v697 = vsel %vm633, %v587, %v681
    %v698 = vsel %vm634, %v589, %v682
    %v699 = vsel %vm635, %v593, %v683
    %v700 = vsel %vm636, %v595, %v684
    %v701 = vsel %vm637, %v599, %v685
    %v702 = vsel %vm638, %v601, %v686
    %v703 = vsel %vm639, %v605, %v687
    %v704 = vsel %vm640, %v607, %v688
    %v705 = vsel %vm641, %v611, %v689
    %v706 = vsel %vm642, %v613, %v690
    %v707 = vsel %vm643, %v617, %v691
    %v708 = vsel %vm644, %v619, %v692
    %v709 = vsel %vm645, %v623, %v693
    %v710 = vsel %vm646, %v625, %v694
    %v711 = vsel %vm647, %v629, %v695
    %v712 = vsel %vm648, %v631, %v696
    %v713 = vld [vmem:[%s3] sm:$0xff]
    %v714 = vld [vmem:[%s3 + $0x8] sm:$0xff]
    %v715 = vld [vmem:[%s3 + $0x10] sm:$0xff]
    %v716 = vld [vmem:[%s3 + $0x18] sm:$0xff]
    %v717 = vld [vmem:[%s3 + $0x20] sm:$0xff]
    %v718 = vld [vmem:[%s3 + $0x28] sm:$0xff]
    %v719 = vld [vmem:[%s3 + $0x30] sm:$0xff]
    %v720 = vld [vmem:[%s3 + $0x38] sm:$0xff]
    %v721 = vld [vmem:[%s1 + $0x60] sm:$0xff]
    %v722 = vld [vmem:[%s1 + $0x68] sm:$0xff]
    %v723 = vld [vmem:[%s1 + $0x70] sm:$0xff]
    %v724 = vld [vmem:[%s1 + $0x78] sm:$0xff]
    %v725 = vld [vmem:[%s1 + $0x80] sm:$0xff]
    %v726 = vld [vmem:[%s1 + $0x88] sm:$0xff]
    %v727 = vld [vmem:[%s1 + $0x90] sm:$0xff]
    %v728 = vld [vmem:[%s1 + $0x98] sm:$0xff]
    %v730 = vsel %vm57, %v721, 0
    %v733 = vsel %vm57, %v722, 0
    %v736 = vsel %vm57, %v723, 0
    %v739 = vsel %vm57, %v724, 0
    %v742 = vsel %vm57, %v725, 0
    %v745 = vsel %vm57, %v726, 0
    %v748 = vsel %vm57, %v727, 0
    %v751 = vsel %vm57, %v728, 0
    %753 = vmatprep.subr.mxu0 %v433
    %754 = vmatpush1.msra.mxu0 %v432
    %755 = vmatprep.subr.mxu0 %v435
    %756 = vmatpush1.msra.mxu0 %v434
    %757 = vmatprep.subr.mxu0 %v437
    %758 = vmatpush1.msra.mxu0 %v436
    %759 = vmatprep.subr.mxu0 %v439
    %760 = vmatpush1.msra.mxu0 %v438
    %761 = vmatprep.subr.mxu0 0.0
    %762 = vmatpush1.msra.mxu0 0.0
    %763 = vmatprep.subr.mxu0 0.0
    %764 = vmatpush1.msra.mxu0 0.0
    %765 = vmatprep.subr.mxu0 0.0
    %766 = vmatpush1.msra.mxu0 0.0
    %767 = vmatprep.subr.mxu0 0.0
    %768 = vmatpush1.msra.mxu0 0.0
    %769 = vmatprep.subr.mxu0 0.0
    %770 = vmatpush1.msra.mxu0 0.0
    %771 = vmatprep.subr.mxu0 0.0
    %772 = vmatpush1.msra.mxu0 0.0
    %773 = vmatprep.subr.mxu0 0.0
    %774 = vmatpush1.msra.mxu0 0.0
    %775 = vmatprep.subr.mxu0 0.0
    %776 = vmatpush1.msra.mxu0 0.0
    %777 = vmatprep.subr.mxu0 0.0
    %778 = vmatpush1.msra.mxu0 0.0
    %779 = vmatprep.subr.mxu0 0.0
    %780 = vmatpush1.msra.mxu0 0.0
    %781 = vmatprep.subr.mxu0 0.0
    %782 = vmatpush1.msra.mxu0 0.0
    %783 = vmatprep.subr.mxu0 0.0
    %784 = vmatpush1.msra.mxu0 0.0
    %785 = vmatprep.subr.mxu0 0.0
    %786 = vmatpush1.msra.mxu0 0.0
    %787 = vmatprep.subr.mxu0 0.0
    %788 = vmatpush1.msra.mxu0 0.0
    %789 = vmatprep.subr.mxu0 0.0
    %790 = vmatpush1.msra.mxu0 0.0
    %791 = vmatprep.subr.mxu0 0.0
    %792 = vmatpush1.msra.mxu0 0.0
    %793 = vmatprep.subr.mxu0 0.0
    %794 = vmatpush1.msra.mxu0 0.0
    %795 = vmatprep.subr.mxu0 0.0
    %796 = vmatpush1.msra.mxu0 0.0
    %797 = vmatprep.subr.mxu0 0.0
    %798 = vmatpush1.msra.mxu0 0.0
    %799 = vmatprep.subr.mxu0 0.0
    %800 = vmatpush1.msra.mxu0 0.0
    %801 = vmatprep.subr.mxu0 0.0
    %802 = vmatpush1.msra.mxu0 0.0
    %803 = vmatprep.subr.mxu0 0.0
    %804 = vmatpush1.msra.mxu0 0.0
    %805 = vmatprep.subr.mxu0 0.0
    %806 = vmatpush1.msra.mxu0 0.0
    %807 = vmatprep.subr.mxu0 0.0
    %808 = vmatpush1.msra.mxu0 0.0
    %809 = vmatprep.subr.mxu0 0.0
    %810 = vmatpush1.msra.mxu0 0.0
    %811 = vmatprep.subr.mxu0 0.0
    %812 = vmatpush1.msra.mxu0 0.0
    %813 = vmatprep.subr.mxu0 0.0
    %814 = vmatpush1.msra.mxu0 0.0
    %815 = vmatprep.subr.mxu0 0.0
    %816 = vmatpush1.msra.mxu0 0.0
    %817 = vmatprep.mubr.f32.mxu0 0.0
    %818 = vmatmul.mubr.f32.gmra.mrb[0].mxu0 %v730
    %v819 = vpop.f32.mrb[0].mxu0
    %v820 = vadd.f32 0.0, %v819
    %v821 = vpop.f32.mrb[0].mxu0
    %v822 = vadd.f32 0.0, %v821
    %823 = vmatprep.mubr.f32.mxu0 0.0
    %824 = vmatmul.mubr.f32.gmra.mrb[0].mxu0 %v733
    %v825 = vpop.f32.mrb[0].mxu0
    %v826 = vadd.f32 0.0, %v825
    %v827 = vpop.f32.mrb[0].mxu0
    %v828 = vadd.f32 0.0, %v827
    %829 = vmatprep.mubr.f32.mxu0 0.0
    %830 = vmatmul.mubr.f32.gmra.mrb[0].mxu0 %v736
    %v831 = vpop.f32.mrb[0].mxu0
    %v832 = vadd.f32 0.0, %v831
    %v833 = vpop.f32.mrb[0].mxu0
    %v834 = vadd.f32 0.0, %v833
    %835 = vmatprep.mubr.f32.mxu0 0.0
    %836 = vmatmul.mubr.f32.gmra.mrb[0].mxu0 %v739
    %v837 = vpop.f32.mrb[0].mxu0
    %v838 = vadd.f32 0.0, %v837
    %v839 = vpop.f32.mrb[0].mxu0
    %v840 = vadd.f32 0.0, %v839
    %841 = vmatprep.mubr.f32.mxu0 0.0
    %842 = vmatmul.mubr.f32.gmra.mrb[0].mxu0 %v742
    %v843 = vpop.f32.mrb[0].mxu0
    %v844 = vadd.f32 0.0, %v843
    %v845 = vpop.f32.mrb[0].mxu0
    %v846 = vadd.f32 0.0, %v845
    %847 = vmatprep.mubr.f32.mxu0 0.0
    %848 = vmatmul.mubr.f32.gmra.mrb[0].mxu0 %v745
    %v849 = vpop.f32.mrb[0].mxu0
    %v850 = vadd.f32 0.0, %v849
    %v851 = vpop.f32.mrb[0].mxu0
    %v852 = vadd.f32 0.0, %v851
    %853 = vmatprep.mubr.f32.mxu0 0.0
    %854 = vmatmul.mubr.f32.gmra.mrb[0].mxu0 %v748
    %v855 = vpop.f32.mrb[0].mxu0
    %v856 = vadd.f32 0.0, %v855
    %v857 = vpop.f32.mrb[0].mxu0
    %v858 = vadd.f32 0.0, %v857
    %859 = vmatprep.mubr.f32.mxu0 0.0
    %860 = vmatmul.mubr.f32.gmra.mrb[0].mxu0 %v751
    %v861 = vpop.f32.mrb[0].mxu0
    %v862 = vadd.f32 0.0, %v861
    %v863 = vpop.f32.mrb[0].mxu0
    %v864 = vadd.f32 0.0, %v863
    %865 = vdwg.mxu0
    %vm866 = vcmask 523264
    %v868 = vsel %vm866, %v713, 0
    %v871 = vsel %vm866, %v714, 0
    %v874 = vsel %vm866, %v715, 0
    %v877 = vsel %vm866, %v716, 0
    %v880 = vsel %vm866, %v717, 0
    %v883 = vsel %vm866, %v718, 0
    %v886 = vsel %vm866, %v719, 0
    %v889 = vsel %vm866, %v720, 0
    %891 = vmatprep.subr.mxu0 %v698
    %892 = vmatpush1.msra.mxu0 %v697
    %893 = vmatprep.subr.mxu0 %v700
    %894 = vmatpush1.msra.mxu0 %v699
    %895 = vmatprep.subr.mxu0 %v702
    %896 = vmatpush1.msra.mxu0 %v701
    %897 = vmatprep.subr.mxu0 %v704
    %898 = vmatpush1.msra.mxu0 %v703
    %899 = vmatprep.subr.mxu0 %v706
    %900 = vmatpush1.msra.mxu0 %v705
    %901 = vmatprep.subr.mxu0 %v708
    %902 = vmatpush1.msra.mxu0 %v707
    %903 = vmatprep.subr.mxu0 %v710
    %904 = vmatpush1.msra.mxu0 %v709
    %905 = vmatprep.subr.mxu0 %v712
    %906 = vmatpush1.msra.mxu0 %v711
    %907 = vmatprep.subr.mxu0 0.0
    %908 = vmatpush1.msra.mxu0 0.0
    %909 = vmatprep.subr.mxu0 0.0
    %910 = vmatpush1.msra.mxu0 0.0
    %911 = vmatprep.subr.mxu0 0.0
    %912 = vmatpush1.msra.mxu0 0.0
    %913 = vmatprep.subr.mxu0 0.0
    %914 = vmatpush1.msra.mxu0 0.0
    %915 = vmatprep.subr.mxu0 0.0
    %916 = vmatpush1.msra.mxu0 0.0
    %917 = vmatprep.subr.mxu0 0.0
    %918 = vmatpush1.msra.mxu0 0.0
    %919 = vmatprep.subr.mxu0 0.0
    %920 = vmatpush1.msra.mxu0 0.0
    %921 = vmatprep.subr.mxu0 0.0
    %922 = vmatpush1.msra.mxu0 0.0
    %923 = vmatprep.subr.mxu0 0.0
    %924 = vmatpush1.msra.mxu0 0.0
    %925 = vmatprep.subr.mxu0 0.0
    %926 = vmatpush1.msra.mxu0 0.0
    %927 = vmatprep.subr.mxu0 0.0
    %928 = vmatpush1.msra.mxu0 0.0
    %929 = vmatprep.subr.mxu0 0.0
    %930 = vmatpush1.msra.mxu0 0.0
    %931 = vmatprep.subr.mxu0 0.0
    %932 = vmatpush1.msra.mxu0 0.0
    %933 = vmatprep.subr.mxu0 0.0
    %934 = vmatpush1.msra.mxu0 0.0
    %935 = vmatprep.subr.mxu0 0.0
    %936 = vmatpush1.msra.mxu0 0.0
    %937 = vmatprep.subr.mxu0 0.0
    %938 = vmatpush1.msra.mxu0 0.0
    %939 = vmatprep.subr.mxu0 0.0
    %940 = vmatpush1.msra.mxu0 0.0
    %941 = vmatprep.subr.mxu0 0.0
    %942 = vmatpush1.msra.mxu0 0.0
    %943 = vmatprep.subr.mxu0 0.0
    %944 = vmatpush1.msra.mxu0 0.0
    %945 = vmatprep.subr.mxu0 0.0
    %946 = vmatpush1.msra.mxu0 0.0
    %947 = vmatprep.subr.mxu0 0.0
    %948 = vmatpush1.msra.mxu0 0.0
    %949 = vmatprep.subr.mxu0 0.0
    %950 = vmatpush1.msra.mxu0 0.0
    %951 = vmatprep.subr.mxu0 0.0
    %952 = vmatpush1.msra.mxu0 0.0
    %953 = vmatprep.subr.mxu0 0.0
    %954 = vmatpush1.msra.mxu0 0.0
    %955 = vmatprep.mubr.f32.mxu0 0.0
    %956 = vmatmul.mubr.f32.gmra.mrb[0].mxu0 %v868
    %v957 = vpop.f32.mrb[0].mxu0
    %v958 = vadd.f32 %v820, %v957
    %v959 = vpop.f32.mrb[0].mxu0
    %v960 = vadd.f32 %v822, %v959
    %961 = vmatprep.mubr.f32.mxu0 0.0
    %962 = vmatmul.mubr.f32.gmra.mrb[0].mxu0 %v871
    %v963 = vpop.f32.mrb[0].mxu0
    %v964 = vadd.f32 %v826, %v963
    %v965 = vpop.f32.mrb[0].mxu0
    %v966 = vadd.f32 %v828, %v965
    %967 = vmatprep.mubr.f32.mxu0 0.0
    %968 = vmatmul.mubr.f32.gmra.mrb[0].mxu0 %v874
    %v969 = vpop.f32.mrb[0].mxu0
    %v970 = vadd.f32 %v832, %v969
    %v971 = vpop.f32.mrb[0].mxu0
    %v972 = vadd.f32 %v834, %v971
    %973 = vmatprep.mubr.f32.mxu0 0.0
    %974 = vmatmul.mubr.f32.gmra.mrb[0].mxu0 %v877
    %v975 = vpop.f32.mrb[0].mxu0
    %v976 = vadd.f32 %v838, %v975
    %v977 = vpop.f32.mrb[0].mxu0
    %v978 = vadd.f32 %v840, %v977
    %979 = vmatprep.mubr.f32.mxu0 0.0
    %980 = vmatmul.mubr.f32.gmra.mrb[0].mxu0 %v880
    %v981 = vpop.f32.mrb[0].mxu0
    %v982 = vadd.f32 %v844, %v981
    %v983 = vpop.f32.mrb[0].mxu0
    %v984 = vadd.f32 %v846, %v983
    %985 = vmatprep.mubr.f32.mxu0 0.0
    %986 = vmatmul.mubr.f32.gmra.mrb[0].mxu0 %v883
    %v987 = vpop.f32.mrb[0].mxu0
    %v988 = vadd.f32 %v850, %v987
    %v989 = vpop.f32.mrb[0].mxu0
    %v990 = vadd.f32 %v852, %v989
    %991 = vmatprep.mubr.f32.mxu0 0.0
    %992 = vmatmul.mubr.f32.gmra.mrb[0].mxu0 %v886
    %v993 = vpop.f32.mrb[0].mxu0
    %v994 = vadd.f32 %v856, %v993
    %v995 = vpop.f32.mrb[0].mxu0
    %v996 = vadd.f32 %v858, %v995
    %997 = vmatprep.mubr.f32.mxu0 0.0
    %998 = vmatmul.mubr.f32.gmra.mrb[0].mxu0 %v889
    %v999 = vpop.f32.mrb[0].mxu0
    %v1000 = vadd.f32 %v862, %v999
    %v1001 = vpop.f32.mrb[0].mxu0
    %v1002 = vadd.f32 %v864, %v1001
    %1003 = vdwg.mxu0
    %v1004 = vld [vmem:[%s4 + $0xa0] sm:$0xff]
    %v1005 = vld [vmem:[%s4 + $0xa8] sm:$0xff]
    %v1006 = vld [vmem:[%s4 + $0xb0] sm:$0xff]
    %v1007 = vld [vmem:[%s4 + $0xb8] sm:$0xff]
    %v1008 = vld [vmem:[%s4 + $0xc0] sm:$0xff]
    %v1009 = vld [vmem:[%s4 + $0xc8] sm:$0xff]
    %v1010 = vld [vmem:[%s4 + $0xd0] sm:$0xff]
    %v1011 = vld [vmem:[%s4 + $0xd8] sm:$0xff]
    %1013 = vset.pattern.permute.xlu0 0
    %1014 = vperm.xlu0 %1013, %v1004
    %v1015 = vpop.permute.xlu0 %1014
    %1018 = vset.pattern.permute.xlu0 0
    %1019 = vperm.xlu0 %1018, %v1005
    %v1020 = vpop.permute.xlu0 %1019
    %1023 = vset.pattern.permute.xlu0 0
    %1024 = vperm.xlu0 %1023, %v1006
    %v1025 = vpop.permute.xlu0 %1024
    %1028 = vset.pattern.permute.xlu0 0
    %1029 = vperm.xlu0 %1028, %v1007
    %v1030 = vpop.permute.xlu0 %1029
    %1033 = vset.pattern.permute.xlu0 0
    %1034 = vperm.xlu0 %1033, %v1008
    %v1035 = vpop.permute.xlu0 %1034
    %1038 = vset.pattern.permute.xlu0 0
    %1039 = vperm.xlu0 %1038, %v1009
    %v1040 = vpop.permute.xlu0 %1039
    %1043 = vset.pattern.permute.xlu0 0
    %1044 = vperm.xlu0 %1043, %v1010
    %v1045 = vpop.permute.xlu0 %1044
    %1048 = vset.pattern.permute.xlu0 0
    %1049 = vperm.xlu0 %1048, %v1011
    %v1050 = vpop.permute.xlu0 %1049
    %v1052 = vadd.f32 %v958, %v1015
    %v1053 = vadd.f32 %v960, %v1015
    %v1054 = vadd.f32 %v964, %v1020
    %v1055 = vadd.f32 %v966, %v1020
    %v1056 = vadd.f32 %v970, %v1025
    %v1057 = vadd.f32 %v972, %v1025
    %v1058 = vadd.f32 %v976, %v1030
    %v1059 = vadd.f32 %v978, %v1030
    %v1060 = vadd.f32 %v982, %v1035
    %v1061 = vadd.f32 %v984, %v1035
    %v1062 = vadd.f32 %v988, %v1040
    %v1063 = vadd.f32 %v990, %v1040
    %v1064 = vadd.f32 %v994, %v1045
    %v1065 = vadd.f32 %v996, %v1045
    %v1066 = vadd.f32 %v1000, %v1050
    %v1067 = vadd.f32 %v1002, %v1050
    %vm1068 = vcmp.gt.f32.partialorder %v1052, 0.0
    %vm1069 = vcmp.gt.f32.partialorder %v1053, 0.0
    %vm1070 = vcmp.gt.f32.partialorder %v1054, 0.0
    %vm1071 = vcmp.gt.f32.partialorder %v1055, 0.0
    %vm1072 = vcmp.gt.f32.partialorder %v1056, 0.0
    %vm1073 = vcmp.gt.f32.partialorder %v1057, 0.0
    %vm1074 = vcmp.gt.f32.partialorder %v1058, 0.0
    %vm1075 = vcmp.gt.f32.partialorder %v1059, 0.0
    %vm1076 = vcmp.gt.f32.partialorder %v1060, 0.0
    %vm1077 = vcmp.gt.f32.partialorder %v1061, 0.0
    %vm1078 = vcmp.gt.f32.partialorder %v1062, 0.0
    %vm1079 = vcmp.gt.f32.partialorder %v1063, 0.0
    %vm1080 = vcmp.gt.f32.partialorder %v1064, 0.0
    %vm1081 = vcmp.gt.f32.partialorder %v1065, 0.0
    %vm1082 = vcmp.gt.f32.partialorder %v1066, 0.0
    %vm1083 = vcmp.gt.f32.partialorder %v1067, 0.0
    %v1084 = vmul.f32 %v1052, 1.442695
    %v1085 = vpow.pop %v1084
    %v1086 = vmul.f32 %v1053, 1.442695
    %v1087 = vpow.pop %v1086
    %v1088 = vmul.f32 %v1054, 1.442695
    %v1089 = vpow.pop %v1088
    %v1090 = vmul.f32 %v1055, 1.442695
    %v1091 = vpow.pop %v1090
    %v1092 = vmul.f32 %v1056, 1.442695
    %v1093 = vpow.pop %v1092
    %v1094 = vmul.f32 %v1057, 1.442695
    %v1095 = vpow.pop %v1094
    %v1096 = vmul.f32 %v1058, 1.442695
    %v1097 = vpow.pop %v1096
    %v1098 = vmul.f32 %v1059, 1.442695
    %v1099 = vpow.pop %v1098
    %v1100 = vmul.f32 %v1060, 1.442695
    %v1101 = vpow.pop %v1100
    %v1102 = vmul.f32 %v1061, 1.442695
    %v1103 = vpow.pop %v1102
    %v1104 = vmul.f32 %v1062, 1.442695
    %v1105 = vpow.pop %v1104
    %v1106 = vmul.f32 %v1063, 1.442695
    %v1107 = vpow.pop %v1106
    %v1108 = vmul.f32 %v1064, 1.442695
    %v1109 = vpow.pop %v1108
    %v1110 = vmul.f32 %v1065, 1.442695
    %v1111 = vpow.pop %v1110
    %v1112 = vmul.f32 %v1066, 1.442695
    %v1113 = vpow.pop %v1112
    %v1114 = vmul.f32 %v1067, 1.442695
    %v1115 = vpow.pop %v1114
    %v1116 = vsub.f32 %v1085, 1.0
    %v1117 = vsub.f32 %v1087, 1.0
    %v1118 = vsub.f32 %v1089, 1.0
    %v1119 = vsub.f32 %v1091, 1.0
    %v1120 = vsub.f32 %v1093, 1.0
    %v1121 = vsub.f32 %v1095, 1.0
    %v1122 = vsub.f32 %v1097, 1.0
    %v1123 = vsub.f32 %v1099, 1.0
    %v1124 = vsub.f32 %v1101, 1.0
    %v1125 = vsub.f32 %v1103, 1.0
    %v1126 = vsub.f32 %v1105, 1.0
    %v1127 = vsub.f32 %v1107, 1.0
    %v1128 = vsub.f32 %v1109, 1.0
    %v1129 = vsub.f32 %v1111, 1.0
    %v1130 = vsub.f32 %v1113, 1.0
    %v1131 = vsub.f32 %v1115, 1.0
    %v1132 = vsel %vm1068, %v1052, %v1116
    %v1133 = vsel %vm1069, %v1053, %v1117
    %v1134 = vsel %vm1070, %v1054, %v1118
    %v1135 = vsel %vm1071, %v1055, %v1119
    %v1136 = vsel %vm1072, %v1056, %v1120
    %v1137 = vsel %vm1073, %v1057, %v1121
    %v1138 = vsel %vm1074, %v1058, %v1122
    %v1139 = vsel %vm1075, %v1059, %v1123
    %v1140 = vsel %vm1076, %v1060, %v1124
    %v1141 = vsel %vm1077, %v1061, %v1125
    %v1142 = vsel %vm1078, %v1062, %v1126
    %v1143 = vsel %vm1079, %v1063, %v1127
    %v1144 = vsel %vm1080, %v1064, %v1128
    %v1145 = vsel %vm1081, %v1065, %v1129
    %v1146 = vsel %vm1082, %v1066, %v1130
    %v1147 = vsel %vm1083, %v1067, %v1131
    %v1148 = vld [vmem:[%s3 + $0x40] sm:$0xff]
    %v1149 = vld [vmem:[%s3 + $0x48] sm:$0xff]
    %v1150 = vld [vmem:[%s3 + $0x50] sm:$0xff]
    %v1151 = vld [vmem:[%s3 + $0x58] sm:$0xff]
    %v1152 = vld [vmem:[%s3 + $0x60] sm:$0xff]
    %v1153 = vld [vmem:[%s3 + $0x68] sm:$0xff]
    %v1154 = vld [vmem:[%s3 + $0x70] sm:$0xff]
    %v1155 = vld [vmem:[%s3 + $0x78] sm:$0xff]
    %v1156 = vld [vmem:[%s4 + $0xe0] sm:$0xff]
    %v1157 = vld [vmem:[%s4 + $0xe8] sm:$0xff]
    %v1158 = vld [vmem:[%s4 + $0xf0] sm:$0xff]
    %v1159 = vld [vmem:[%s4 + $0xf8] sm:$0xff]
    %v1160 = vld [vmem:[%s4 + $0x100] sm:$0xff]
    %v1161 = vld [vmem:[%s4 + $0x108] sm:$0xff]
    %v1162 = vld [vmem:[%s4 + $0x110] sm:$0xff]
    %v1163 = vld [vmem:[%s4 + $0x118] sm:$0xff]
    %1165 = vset.pattern.permute.xlu0 0
    %1166 = vperm.xlu0 %1165, %v1156
    %v1167 = vpop.permute.xlu0 %1166
    %1170 = vset.pattern.permute.xlu0 0
    %1171 = vperm.xlu0 %1170, %v1157
    %v1172 = vpop.permute.xlu0 %1171
    %1175 = vset.pattern.permute.xlu0 0
    %1176 = vperm.xlu0 %1175, %v1158
    %v1177 = vpop.permute.xlu0 %1176
    %1180 = vset.pattern.permute.xlu0 0
    %1181 = vperm.xlu0 %1180, %v1159
    %v1182 = vpop.permute.xlu0 %1181
    %1185 = vset.pattern.permute.xlu0 0
    %1186 = vperm.xlu0 %1185, %v1160
    %v1187 = vpop.permute.xlu0 %1186
    %1190 = vset.pattern.permute.xlu0 0
    %1191 = vperm.xlu0 %1190, %v1161
    %v1192 = vpop.permute.xlu0 %1191
    %1195 = vset.pattern.permute.xlu0 0
    %1196 = vperm.xlu0 %1195, %v1162
    %v1197 = vpop.permute.xlu0 %1196
    %1200 = vset.pattern.permute.xlu0 0
    %1201 = vperm.xlu0 %1200, %v1163
    %v1202 = vpop.permute.xlu0 %1201
    %v1205 = vsel %vm866, %v1148, 0
    %v1208 = vsel %vm866, %v1149, 0
    %v1211 = vsel %vm866, %v1150, 0
    %v1214 = vsel %vm866, %v1151, 0
    %v1217 = vsel %vm866, %v1152, 0
    %v1220 = vsel %vm866, %v1153, 0
    %v1223 = vsel %vm866, %v1154, 0
    %v1226 = vsel %vm866, %v1155, 0
    %1228 = vmatprep.subr.mxu0 %v1133
    %1229 = vmatpush1.msra.mxu0 %v1132
    %1230 = vmatprep.subr.mxu0 %v1135
    %1231 = vmatpush1.msra.mxu0 %v1134
    %1232 = vmatprep.subr.mxu0 %v1137
    %1233 = vmatpush1.msra.mxu0 %v1136
    %1234 = vmatprep.subr.mxu0 %v1139
    %1235 = vmatpush1.msra.mxu0 %v1138
    %1236 = vmatprep.subr.mxu0 %v1141
    %1237 = vmatpush1.msra.mxu0 %v1140
    %1238 = vmatprep.subr.mxu0 %v1143
    %1239 = vmatpush1.msra.mxu0 %v1142
    %1240 = vmatprep.subr.mxu0 %v1145
    %1241 = vmatpush1.msra.mxu0 %v1144
    %1242 = vmatprep.subr.mxu0 %v1147
    %1243 = vmatpush1.msra.mxu0 %v1146
    %1244 = vmatprep.subr.mxu0 0.0
    %1245 = vmatpush1.msra.mxu0 0.0
    %1246 = vmatprep.subr.mxu0 0.0
    %1247 = vmatpush1.msra.mxu0 0.0
    %1248 = vmatprep.subr.mxu0 0.0
    %1249 = vmatpush1.msra.mxu0 0.0
    %1250 = vmatprep.subr.mxu0 0.0
    %1251 = vmatpush1.msra.mxu0 0.0
    %1252 = vmatprep.subr.mxu0 0.0
    %1253 = vmatpush1.msra.mxu0 0.0
    %1254 = vmatprep.subr.mxu0 0.0
    %1255 = vmatpush1.msra.mxu0 0.0
    %1256 = vmatprep.subr.mxu0 0.0
    %1257 = vmatpush1.msra.mxu0 0.0
    %1258 = vmatprep.subr.mxu0 0.0
    %1259 = vmatpush1.msra.mxu0 0.0
    %1260 = vmatprep.subr.mxu0 0.0
    %1261 = vmatpush1.msra.mxu0 0.0
    %1262 = vmatprep.subr.mxu0 0.0
    %1263 = vmatpush1.msra.mxu0 0.0
    %1264 = vmatprep.subr.mxu0 0.0
    %1265 = vmatpush1.msra.mxu0 0.0
    %1266 = vmatprep.subr.mxu0 0.0
    %1267 = vmatpush1.msra.mxu0 0.0
    %1268 = vmatprep.subr.mxu0 0.0
    %1269 = vmatpush1.msra.mxu0 0.0
    %1270 = vmatprep.subr.mxu0 0.0
    %1271 = vmatpush1.msra.mxu0 0.0
    %1272 = vmatprep.subr.mxu0 0.0
    %1273 = vmatpush1.msra.mxu0 0.0
    %1274 = vmatprep.subr.mxu0 0.0
    %1275 = vmatpush1.msra.mxu0 0.0
    %1276 = vmatprep.subr.mxu0 0.0
    %1277 = vmatpush1.msra.mxu0 0.0
    %1278 = vmatprep.subr.mxu0 0.0
    %1279 = vmatpush1.msra.mxu0 0.0
    %1280 = vmatprep.subr.mxu0 0.0
    %1281 = vmatpush1.msra.mxu0 0.0
    %1282 = vmatprep.subr.mxu0 0.0
    %1283 = vmatpush1.msra.mxu0 0.0
    %1284 = vmatprep.subr.mxu0 0.0
    %1285 = vmatpush1.msra.mxu0 0.0
    %1286 = vmatprep.subr.mxu0 0.0
    %1287 = vmatpush1.msra.mxu0 0.0
    %1288 = vmatprep.subr.mxu0 0.0
    %1289 = vmatpush1.msra.mxu0 0.0
    %1290 = vmatprep.subr.mxu0 0.0
    %1291 = vmatpush1.msra.mxu0 0.0
    %1292 = vmatprep.mubr.f32.mxu0 0.0
    %1293 = vmatmul.mubr.f32.gmra.mrb[0].mxu0 %v1205
    %v1294 = vpop.f32.mrb[0].mxu0
    %v1295 = vadd.f32 %v1167, %v1294
    %v1296 = vpop.f32.mrb[0].mxu0
    %v1297 = vadd.f32 %v1167, %v1296
    %1298 = vmatprep.mubr.f32.mxu0 0.0
    %1299 = vmatmul.mubr.f32.gmra.mrb[0].mxu0 %v1208
    %v1300 = vpop.f32.mrb[0].mxu0
    %v1301 = vadd.f32 %v1172, %v1300
    %v1302 = vpop.f32.mrb[0].mxu0
    %v1303 = vadd.f32 %v1172, %v1302
    %1304 = vmatprep.mubr.f32.mxu0 0.0
    %1305 = vmatmul.mubr.f32.gmra.mrb[0].mxu0 %v1211
    %v1306 = vpop.f32.mrb[0].mxu0
    %v1307 = vadd.f32 %v1177, %v1306
    %v1308 = vpop.f32.mrb[0].mxu0
    %v1309 = vadd.f32 %v1177, %v1308
    %1310 = vmatprep.mubr.f32.mxu0 0.0
    %1311 = vmatmul.mubr.f32.gmra.mrb[0].mxu0 %v1214
    %v1312 = vpop.f32.mrb[0].mxu0
    %v1313 = vadd.f32 %v1182, %v1312
    %v1314 = vpop.f32.mrb[0].mxu0
    %v1315 = vadd.f32 %v1182, %v1314
    %1316 = vmatprep.mubr.f32.mxu0 0.0
    %1317 = vmatmul.mubr.f32.gmra.mrb[0].mxu0 %v1217
    %v1318 = vpop.f32.mrb[0].mxu0
    %v1319 = vadd.f32 %v1187, %v1318
    %v1320 = vpop.f32.mrb[0].mxu0
    %v1321 = vadd.f32 %v1187, %v1320
    %1322 = vmatprep.mubr.f32.mxu0 0.0
    %1323 = vmatmul.mubr.f32.gmra.mrb[0].mxu0 %v1220
    %v1324 = vpop.f32.mrb[0].mxu0
    %v1325 = vadd.f32 %v1192, %v1324
    %v1326 = vpop.f32.mrb[0].mxu0
    %v1327 = vadd.f32 %v1192, %v1326
    %1328 = vmatprep.mubr.f32.mxu0 0.0
    %1329 = vmatmul.mubr.f32.gmra.mrb[0].mxu0 %v1223
    %v1330 = vpop.f32.mrb[0].mxu0
    %v1331 = vadd.f32 %v1197, %v1330
    %v1332 = vpop.f32.mrb[0].mxu0
    %v1333 = vadd.f32 %v1197, %v1332
    %1334 = vmatprep.mubr.f32.mxu0 0.0
    %1335 = vmatmul.mubr.f32.gmra.mrb[0].mxu0 %v1226
    %v1336 = vpop.f32.mrb[0].mxu0
    %v1337 = vadd.f32 %v1202, %v1336
    %v1338 = vpop.f32.mrb[0].mxu0
    %v1339 = vadd.f32 %v1202, %v1338
    %1340 = vdwg.mxu0
    %vm1341 = vcmp.gt.f32.partialorder %v1295, 0.0
    %vm1342 = vcmp.gt.f32.partialorder %v1297, 0.0
    %vm1343 = vcmp.gt.f32.partialorder %v1301, 0.0
    %vm1344 = vcmp.gt.f32.partialorder %v1303, 0.0
    %vm1345 = vcmp.gt.f32.partialorder %v1307, 0.0
    %vm1346 = vcmp.gt.f32.partialorder %v1309, 0.0
    %vm1347 = vcmp.gt.f32.partialorder %v1313, 0.0
    %vm1348 = vcmp.gt.f32.partialorder %v1315, 0.0
    %vm1349 = vcmp.gt.f32.partialorder %v1319, 0.0
    %vm1350 = vcmp.gt.f32.partialorder %v1321, 0.0
    %vm1351 = vcmp.gt.f32.partialorder %v1325, 0.0
    %vm1352 = vcmp.gt.f32.partialorder %v1327, 0.0
    %vm1353 = vcmp.gt.f32.partialorder %v1331, 0.0
    %vm1354 = vcmp.gt.f32.partialorder %v1333, 0.0
    %vm1355 = vcmp.gt.f32.partialorder %v1337, 0.0
    %vm1356 = vcmp.gt.f32.partialorder %v1339, 0.0
    %v1357 = vmul.f32 %v1295, 1.442695
    %v1358 = vpow.pop %v1357
    %v1359 = vmul.f32 %v1297, 1.442695
    %v1360 = vpow.pop %v1359
    %v1361 = vmul.f32 %v1301, 1.442695
    %v1362 = vpow.pop %v1361
    %v1363 = vmul.f32 %v1303, 1.442695
    %v1364 = vpow.pop %v1363
    %v1365 = vmul.f32 %v1307, 1.442695
    %v1366 = vpow.pop %v1365
    %v1367 = vmul.f32 %v1309, 1.442695
    %v1368 = vpow.pop %v1367
    %v1369 = vmul.f32 %v1313, 1.442695
    %v1370 = vpow.pop %v1369
    %v1371 = vmul.f32 %v1315, 1.442695
    %v1372 = vpow.pop %v1371
    %v1373 = vmul.f32 %v1319, 1.442695
    %v1374 = vpow.pop %v1373
    %v1375 = vmul.f32 %v1321, 1.442695
    %v1376 = vpow.pop %v1375
    %v1377 = vmul.f32 %v1325, 1.442695
    %v1378 = vpow.pop %v1377
    %v1379 = vmul.f32 %v1327, 1.442695
    %v1380 = vpow.pop %v1379
    %v1381 = vmul.f32 %v1331, 1.442695
    %v1382 = vpow.pop %v1381
    %v1383 = vmul.f32 %v1333, 1.442695
    %v1384 = vpow.pop %v1383
    %v1385 = vmul.f32 %v1337, 1.442695
    %v1386 = vpow.pop %v1385
    %v1387 = vmul.f32 %v1339, 1.442695
    %v1388 = vpow.pop %v1387
    %v1389 = vsub.f32 %v1358, 1.0
    %v1390 = vsub.f32 %v1360, 1.0
    %v1391 = vsub.f32 %v1362, 1.0
    %v1392 = vsub.f32 %v1364, 1.0
    %v1393 = vsub.f32 %v1366, 1.0
    %v1394 = vsub.f32 %v1368, 1.0
    %v1395 = vsub.f32 %v1370, 1.0
    %v1396 = vsub.f32 %v1372, 1.0
    %v1397 = vsub.f32 %v1374, 1.0
    %v1398 = vsub.f32 %v1376, 1.0
    %v1399 = vsub.f32 %v1378, 1.0
    %v1400 = vsub.f32 %v1380, 1.0
    %v1401 = vsub.f32 %v1382, 1.0
    %v1402 = vsub.f32 %v1384, 1.0
    %v1403 = vsub.f32 %v1386, 1.0
    %v1404 = vsub.f32 %v1388, 1.0
    %v1405 = vsel %vm1341, %v1295, %v1389
    %v1406 = vsel %vm1342, %v1297, %v1390
    %v1407 = vsel %vm1343, %v1301, %v1391
    %v1408 = vsel %vm1344, %v1303, %v1392
    %v1409 = vsel %vm1345, %v1307, %v1393
    %v1410 = vsel %vm1346, %v1309, %v1394
    %v1411 = vsel %vm1347, %v1313, %v1395
    %v1412 = vsel %vm1348, %v1315, %v1396
    %v1413 = vsel %vm1349, %v1319, %v1397
    %v1414 = vsel %vm1350, %v1321, %v1398
    %v1415 = vsel %vm1351, %v1325, %v1399
    %v1416 = vsel %vm1352, %v1327, %v1400
    %v1417 = vsel %vm1353, %v1331, %v1401
    %v1418 = vsel %vm1354, %v1333, %v1402
    %v1419 = vsel %vm1355, %v1337, %v1403
    %v1420 = vsel %vm1356, %v1339, %v1404
    %v1421 = vld [vmem:[%s3 + $0x80] sm:$0xff]
    %v1422 = vld [vmem:[%s4 + $0x120] sm:$0xff]
    %1424 = vset.pattern.permute.xlu0 0
    %1425 = vperm.xlu0 %1424, %v1422
    %v1426 = vpop.permute.xlu0 %1425
    %v1429 = vsel %vm866, %v1421, 0
    %1431 = vmatprep.subr.mxu0 %v1406
    %1432 = vmatpush1.msra.mxu0 %v1405
    %1433 = vmatprep.subr.mxu0 %v1408
    %1434 = vmatpush1.msra.mxu0 %v1407
    %1435 = vmatprep.subr.mxu0 %v1410
    %1436 = vmatpush1.msra.mxu0 %v1409
    %1437 = vmatprep.subr.mxu0 %v1412
    %1438 = vmatpush1.msra.mxu0 %v1411
    %1439 = vmatprep.subr.mxu0 %v1414
    %1440 = vmatpush1.msra.mxu0 %v1413
    %1441 = vmatprep.subr.mxu0 %v1416
    %1442 = vmatpush1.msra.mxu0 %v1415
    %1443 = vmatprep.subr.mxu0 %v1418
    %1444 = vmatpush1.msra.mxu0 %v1417
    %1445 = vmatprep.subr.mxu0 %v1420
    %1446 = vmatpush1.msra.mxu0 %v1419
    %1447 = vmatprep.subr.mxu0 0.0
    %1448 = vmatpush1.msra.mxu0 0.0
    %1449 = vmatprep.subr.mxu0 0.0
    %1450 = vmatpush1.msra.mxu0 0.0
    %1451 = vmatprep.subr.mxu0 0.0
    %1452 = vmatpush1.msra.mxu0 0.0
    %1453 = vmatprep.subr.mxu0 0.0
    %1454 = vmatpush1.msra.mxu0 0.0
    %1455 = vmatprep.subr.mxu0 0.0
    %1456 = vmatpush1.msra.mxu0 0.0
    %1457 = vmatprep.subr.mxu0 0.0
    %1458 = vmatpush1.msra.mxu0 0.0
    %1459 = vmatprep.subr.mxu0 0.0
    %1460 = vmatpush1.msra.mxu0 0.0
    %1461 = vmatprep.subr.mxu0 0.0
    %1462 = vmatpush1.msra.mxu0 0.0
    %1463 = vmatprep.subr.mxu0 0.0
    %1464 = vmatpush1.msra.mxu0 0.0
    %1465 = vmatprep.subr.mxu0 0.0
    %1466 = vmatpush1.msra.mxu0 0.0
    %1467 = vmatprep.subr.mxu0 0.0
    %1468 = vmatpush1.msra.mxu0 0.0
    %1469 = vmatprep.subr.mxu0 0.0
    %1470 = vmatpush1.msra.mxu0 0.0
    %1471 = vmatprep.subr.mxu0 0.0
    %1472 = vmatpush1.msra.mxu0 0.0
    %1473 = vmatprep.subr.mxu0 0.0
    %1474 = vmatpush1.msra.mxu0 0.0
    %1475 = vmatprep.subr.mxu0 0.0
    %1476 = vmatpush1.msra.mxu0 0.0
    %1477 = vmatprep.subr.mxu0 0.0
    %1478 = vmatpush1.msra.mxu0 0.0
    %1479 = vmatprep.subr.mxu0 0.0
    %1480 = vmatpush1.msra.mxu0 0.0
    %1481 = vmatprep.subr.mxu0 0.0
    %1482 = vmatpush1.msra.mxu0 0.0
    %1483 = vmatprep.subr.mxu0 0.0
    %1484 = vmatpush1.msra.mxu0 0.0
    %1485 = vmatprep.subr.mxu0 0.0
    %1486 = vmatpush1.msra.mxu0 0.0
    %1487 = vmatprep.subr.mxu0 0.0
    %1488 = vmatpush1.msra.mxu0 0.0
    %1489 = vmatprep.subr.mxu0 0.0
    %1490 = vmatpush1.msra.mxu0 0.0
    %1491 = vmatprep.subr.mxu0 0.0
    %1492 = vmatpush1.msra.mxu0 0.0
    %1493 = vmatprep.subr.mxu0 0.0
    %1494 = vmatpush1.msra.mxu0 0.0
    %1495 = vmatprep.mubr.f32.mxu0 0.0
    %1496 = vmatmul.mubr.f32.gmra.mrb[0].mxu0 %v1429
    %v1497 = vpop.f32.mrb[0].mxu0
    %v1498 = vadd.f32 %v1426, %v1497
    %v1499 = vpop.f32.mrb[0].mxu0
    %v1500 = vadd.f32 %v1426, %v1499
    %1501 = vdwg.mxu0
    %vm1502 = vcmp.gt.f32.partialorder %v1498, 0.0
    %vm1503 = vcmp.gt.f32.partialorder %v1500, 0.0
    %v1504 = vmul.f32 %v1498, 1.442695
    %v1505 = vpow.pop %v1504
    %v1506 = vmul.f32 %v1500, 1.442695
    %v1507 = vpow.pop %v1506
    %v1508 = vsub.f32 %v1505, 1.0
    %v1509 = vsub.f32 %v1507, 1.0
    %v1510 = vsel %vm1502, %v1498, %v1508
    %v1511 = vsel %vm1503, %v1500, %v1509
    %1512 = vst [vmem:[#allocation2] sm:$0xff] %v1510
    %1513 = vst [vmem:[#allocation2 + $0x8] sm:$0xff] %v1511
    // Predicated region
    $region22: #{tpu_custom_call.1} parent=1 // pred_check
      _
    $region23: #{tpu_custom_call.1} parent=1 // pred_check_branch
      %1515 = sbr.rel (0) target = $region25
    $region24: #{tpu_custom_call.1} parent=1 // pred_region
      %s1517 = ssub.s32 256, 256
      %1518 = vsyncadd [#allocation3], %s1517
      %s1520 = sshll.u32 [#allocation2], 4
      %s1521 = int_to_ptr.vmem [resolvable:$true] %s1520
      %1523 = dma.vmem_to_hbm [thread:$0]  %s1521, 256, %s5, [#allocation3]
    $region25: #{tpu_custom_call.1} parent=1 // pred_fallthru
      _
    // Predicated region
    $region26: #{tpu_custom_call.1} parent=1 // pred_check
      _
    $region27: #{tpu_custom_call.1} parent=1 // pred_check_branch
      %1525 = sbr.rel (0) target = $region29
    $region28: #{tpu_custom_call.1} parent=1 // pred_region
      %1526 = dma.done [#allocation3], 256
    $region29: #{tpu_custom_call.1} parent=1 // pred_fallthru
      _
    %1527 = vsyncpa [#allocation3], 1

</llo_original>
